<compile_context>
chip_gen: v7x
topology: tpu7x:2x2x1
jax: 0.10.0
libtpu: 0.0.40
codegen_flags: <defaults>
</compile_context>

<pallas_src>
import jax
import jax.numpy as jnp
from jax.experimental import pallas as pl
from jax.experimental.pallas import tpu as pltpu


def _flash_attn_kernel(q_ref, k_ref, v_ref, bias_ref, o_ref,
                       m_scr, l_scr, acc_scr):
    """Grid = (batch*heads, query_tile, kv_tile); kv_tile is the innermost reduction axis."""
    ki = pl.program_id(2)
    nk = pl.num_programs(2)

    # ---- once per (bh, q-tile): reset online-softmax state ----
    @pl.when(ki == 0)
    def _init():
        m_scr[...] = jnp.full(m_scr.shape, -jnp.inf, dtype=m_scr.dtype)
        l_scr[...] = jnp.zeros(l_scr.shape, dtype=l_scr.dtype)
        acc_scr[...] = jnp.zeros(acc_scr.shape, dtype=acc_scr.dtype)

    q = q_ref[0]                      # (TQ, dh) bf16, scale pre-folded in the wrapper
    k = k_ref[0]                      # (TK, dh) bf16
    v = v_ref[0]                      # (TK, dh) bf16

    # scores: q @ k^T, f32 accumulation on the MXU
    s = jax.lax.dot_general(q, k, (((1,), (1,)), ((), ())),
                            preferred_element_type=jnp.float32)        # (TQ, TK) f32
    s = s + bias_ref[0]                                                # bias read/added in f32

    # online softmax update
    m_prev = m_scr[...]                                                # (TQ, 1)
    m_new = jnp.maximum(m_prev, jnp.max(s, axis=-1, keepdims=True))
    alpha = jnp.exp(m_prev - m_new)
    p = jnp.exp(s - m_new)                                             # (TQ, TK) f32
    l_scr[...] = alpha * l_scr[...] + jnp.sum(p, axis=-1, keepdims=True)
    pv = jnp.dot(p.astype(v.dtype), v,
                 preferred_element_type=jnp.float32)                   # (TQ, dh) f32
    acc_scr[...] = alpha * acc_scr[...] + pv
    m_scr[...] = m_new

    # ---- last kv tile: normalize and store ----
    @pl.when(ki == nk - 1)
    def _finalize():
        inv_l = pl.reciprocal(l_scr[...], approx=True)                 # (TQ, 1)
        o_ref[0] = (acc_scr[...] * inv_l).astype(o_ref.dtype)


def attention_forward(x, attn_bias, params, *, heads, dim_head):
    """x: (B, N, D) f32, attn_bias: (B, H, N, N) f32."""
    gamma, beta, wq, wk, wv, wo, bo = params
    B, N, D = x.shape
    inner = heads * dim_head
    scale = dim_head ** (-0.5)
    f32, bf16 = jnp.float32, jnp.bfloat16

    # ---- LayerNorm + Q/K/V projections: plain XLA GEMMs (full MXU width), done once ----
    mu = jnp.mean(x, axis=-1, keepdims=True)
    var = jnp.mean((x - mu) ** 2, axis=-1, keepdims=True)
    xn = (x - mu) * jax.lax.rsqrt(var + 1e-5) * gamma + beta
    q = (xn @ wq) * scale
    k = xn @ wk
    v = xn @ wv

    def to_heads(t):  # (B, N, inner) -> (B*H, N, dh), head-major
        return (t.reshape(B, N, heads, dim_head)
                 .transpose(0, 2, 1, 3)
                 .reshape(B * heads, N, dim_head))

    qh = to_heads(q).astype(bf16)
    kh = to_heads(k).astype(bf16)
    vh = to_heads(v).astype(bf16)

    # ---- pad sequence to a multiple of 128; mask padded keys via large-negative f32 bias ----
    TQ = TK = 128
    Np = pl.cdiv(N, 128) * 128
    pad = Np - N
    if pad:
        qh = jnp.pad(qh, ((0, 0), (0, pad), (0, 0)))
        kh = jnp.pad(kh, ((0, 0), (0, pad), (0, 0)))
        vh = jnp.pad(vh, ((0, 0), (0, pad), (0, 0)))
        bias_p = jnp.full((B, heads, Np, Np), -1e9, dtype=f32)
        bias_p = bias_p.at[:, :, :N, :N].set(attn_bias.astype(f32))
    else:
        bias_p = attn_bias.astype(f32)
    bias_p = bias_p.reshape(B * heads, Np, Np)

    grid = (B * heads, Np // TQ, Np // TK)

    out_h = pl.pallas_call(
        _flash_attn_kernel,
        out_shape=jax.ShapeDtypeStruct((B * heads, Np, dim_head), f32),
        grid_spec=pltpu.PrefetchScalarGridSpec(
            num_scalar_prefetch=0,
            grid=grid,
            in_specs=[
                pl.BlockSpec((1, TQ, dim_head), lambda b, qi, ki: (b, qi, 0)),   # Q tile
                pl.BlockSpec((1, TK, dim_head), lambda b, qi, ki: (b, ki, 0)),   # K tile
                pl.BlockSpec((1, TK, dim_head), lambda b, qi, ki: (b, ki, 0)),   # V tile
                pl.BlockSpec((1, TQ, TK), lambda b, qi, ki: (b, qi, ki)),        # bias tile (f32)
            ],
            out_specs=pl.BlockSpec((1, TQ, dim_head), lambda b, qi, ki: (b, qi, 0)),
            scratch_shapes=[
                pltpu.VMEM((TQ, 1), f32),          # running row max
                pltpu.VMEM((TQ, 1), f32),          # running softmax denom
                pltpu.VMEM((TQ, dim_head), f32),   # output accumulator
            ],
        ),
        compiler_params=pltpu.CompilerParams(
            dimension_semantics=("parallel", "parallel", "arbitrary"),
        ),
    )(qh, kh, vh, bias_p)

    # ---- drop padding, merge heads, output projection as one XLA GEMM ----
    out_h = out_h.reshape(B, heads, Np, dim_head)[:, :, :N, :]
    out_h = out_h.transpose(0, 2, 1, 3).reshape(B, N, inner).astype(x.dtype)
    return out_h @ wo + bo


def attention_reference(x, attn_bias, params, *, heads, dim_head):
    """Pure-JAX f32 reference mirroring the PyTorch forward (eval mode)."""
    gamma, beta, wq, wk, wv, wo, bo = params
    B, N, D = x.shape
    scale = dim_head ** (-0.5)
    mean = jnp.mean(x, axis=-1, keepdims=True)
    var = jnp.mean((x - mean) ** 2, axis=-1, keepdims=True)
    xn = (x - mean) / jnp.sqrt(var + 1e-5) * gamma + beta
    q = xn @ wq
    k = xn @ wk
    v = xn @ wv

    def split(t):
        return t.reshape(B, N, heads, dim_head).transpose(0, 2, 1, 3)

    qh, kh, vh = split(q), split(k), split(v)
    dots = jnp.einsum('bhnd,bhmd->bhnm', qh, kh) * scale + attn_bias
    attn = jax.nn.softmax(dots, axis=-1)
    out = jnp.einsum('bhnm,bhmd->bhnd', attn, vh)
    out = out.transpose(0, 2, 1, 3).reshape(B, N, heads * dim_head)
    return out @ wo + bo


if __name__ == "__main__":
    # Small shapes consistent with the module: dim=32, heads=4, dim_head=8.
    B, N, D = 2, 8, 32
    heads, dim_head = 4, 8
    inner = heads * dim_head

    key = jax.random.PRNGKey(0)
    kx, kb, kq, kk, kv, ko, kbo = jax.random.split(key, 7)

    x = jax.random.normal(kx, (B, N, D), dtype=jnp.float32)
    attn_bias = 0.1 * jax.random.normal(kb, (B, heads, N, N), dtype=jnp.float32)

    gamma = jnp.ones((D,), dtype=jnp.float32)
    beta = jnp.zeros((D,), dtype=jnp.float32)
    wq = 0.05 * jax.random.normal(kq, (D, inner), dtype=jnp.float32)
    wk = 0.05 * jax.random.normal(kk, (D, inner), dtype=jnp.float32)
    wv = 0.05 * jax.random.normal(kv, (D, inner), dtype=jnp.float32)
    wo = 0.05 * jax.random.normal(ko, (inner, D), dtype=jnp.float32)
    bo = 0.05 * jax.random.normal(kbo, (D,), dtype=jnp.float32)
    params = (gamma, beta, wq, wk, wv, wo, bo)

    out = attention_forward(x, attn_bias, params, heads=heads, dim_head=dim_head)
    out = jax.block_until_ready(out)

    ref = attention_reference(x, attn_bias, params, heads=heads, dim_head=dim_head)
    assert out.shape == (B, N, D)
    # bf16 MXU operands + approx softmax reciprocal -> compare at bf16-level tolerance.
    assert jnp.allclose(out, ref, atol=2e-2, rtol=2e-2), "mismatch vs reference"

    print("KERNEL_OK")
</pallas_src>

<mosaic_0001>
module attributes {stable_mosaic.version = 11 : i64} {
  func.func @_flash_attn_kernel(%arg0: i32, %arg1: i32, %arg2: i32, %arg3: memref<1x128x8xbf16, #tpu.memory_space<vmem>>, %arg4: memref<1x128x8xbf16, #tpu.memory_space<vmem>>, %arg5: memref<1x128x8xbf16, #tpu.memory_space<vmem>>, %arg6: memref<1x128x128xf32, #tpu.memory_space<vmem>>, %arg7: memref<1x128x8xf32, #tpu.memory_space<vmem>>, %arg8: memref<128x1xf32, #tpu.memory_space<vmem>>, %arg9: memref<128x1xf32, #tpu.memory_space<vmem>>, %arg10: memref<128x8xf32, #tpu.memory_space<vmem>>) attributes {dimension_semantics = [#tpu.dimension_semantics<parallel>, #tpu.dimension_semantics<parallel>, #tpu.dimension_semantics<arbitrary>], iteration_bounds = array<i64: 8, 1, 1>, scalar_prefetch = 0 : i64, scratch_operands = 3 : i64, tpu.core_type = #tpu.core_type<tc>, window_params = [{transform_indices = @transform_0, window_bounds = array<i64: 1, 128, 8>}, {transform_indices = @transform_1, window_bounds = array<i64: 1, 128, 8>}, {transform_indices = @transform_2, window_bounds = array<i64: 1, 128, 8>}, {transform_indices = @transform_3, window_bounds = array<i64: 1, 128, 128>}, {transform_indices = @transform_4, window_bounds = array<i64: 1, 128, 8>}]} {
    %c0_i32 = arith.constant 0 : i32
    %0 = arith.cmpi eq, %arg2, %c0_i32 : i32
    %1 = arith.extui %0 : i1 to i32
    %c0_i32_0 = arith.constant 0 : i32
    %2 = arith.cmpi ne, %1, %c0_i32_0 : i32
    scf.if %2 {
      %cst_29 = arith.constant 0xFF800000 : f32
      %39 = vector.broadcast %cst_29 : f32 to vector<128x1xf32>
      %c0_30 = arith.constant 0 : index
      %c0_31 = arith.constant 0 : index
      %40 = vector.load %arg8[%c0_30, %c0_31] : memref<128x1xf32, #tpu.memory_space<vmem>>, vector<128x1xf32>
      tpu.vector_store %arg8[%c0_30, %c0_31], %39 {strides = array<i32>} : memref<128x1xf32, #tpu.memory_space<vmem>>, vector<128x1xf32>,
      %cst_32 = arith.constant 0.000000e+00 : f32
      %41 = vector.broadcast %cst_32 : f32 to vector<128x1xf32>
      %c0_33 = arith.constant 0 : index
      %c0_34 = arith.constant 0 : index
      %42 = vector.load %arg9[%c0_33, %c0_34] : memref<128x1xf32, #tpu.memory_space<vmem>>, vector<128x1xf32>
      tpu.vector_store %arg9[%c0_33, %c0_34], %41 {strides = array<i32>} : memref<128x1xf32, #tpu.memory_space<vmem>>, vector<128x1xf32>,
      %cst_35 = arith.constant 0.000000e+00 : f32
      %43 = vector.broadcast %cst_35 : f32 to vector<128x8xf32>
      %c0_36 = arith.constant 0 : index
      %c0_37 = arith.constant 0 : index
      %44 = vector.load %arg10[%c0_36, %c0_37] : memref<128x8xf32, #tpu.memory_space<vmem>>, vector<128x8xf32>
      tpu.vector_store %arg10[%c0_36, %c0_37], %43 {strides = array<i32>} : memref<128x8xf32, #tpu.memory_space<vmem>>, vector<128x8xf32>,
    } else {
    }
    %c0 = arith.constant 0 : index
    %c0_1 = arith.constant 0 : index
    %c0_2 = arith.constant 0 : index
    %3 = vector.load %arg3[%c0, %c0_1, %c0_2] : memref<1x128x8xbf16, #tpu.memory_space<vmem>>, vector<1x128x8xbf16>
    %4 = vector.shape_cast %3 : vector<1x128x8xbf16> to vector<128x8xbf16>
    %c0_3 = arith.constant 0 : index
    %c0_4 = arith.constant 0 : index
    %c0_5 = arith.constant 0 : index
    %5 = vector.load %arg4[%c0_3, %c0_4, %c0_5] : memref<1x128x8xbf16, #tpu.memory_space<vmem>>, vector<1x128x8xbf16>
    %6 = vector.shape_cast %5 : vector<1x128x8xbf16> to vector<128x8xbf16>
    %c0_6 = arith.constant 0 : index
    %c0_7 = arith.constant 0 : index
    %c0_8 = arith.constant 0 : index
    %7 = vector.load %arg5[%c0_6, %c0_7, %c0_8] : memref<1x128x8xbf16, #tpu.memory_space<vmem>>, vector<1x128x8xbf16>
    %8 = vector.shape_cast %7 : vector<1x128x8xbf16> to vector<128x8xbf16>
    %cst = arith.constant dense<0.000000e+00> : vector<128x128xf32>
    %9 = tpu.matmul %4, %6, %cst {dimension_numbers = #tpu.dot_dimension_numbers<[1], [1], [0], [0], [0, 0, 1, 0], [], []>} : vector<128x8xbf16>, vector<128x8xbf16>, vector<128x128xf32> -> vector<128x128xf32>
    %c0_9 = arith.constant 0 : index
    %c0_10 = arith.constant 0 : index
    %c0_11 = arith.constant 0 : index
    %10 = vector.load %arg6[%c0_9, %c0_10, %c0_11] : memref<1x128x128xf32, #tpu.memory_space<vmem>>, vector<1x128x128xf32>
    %11 = vector.shape_cast %10 : vector<1x128x128xf32> to vector<128x128xf32>
    %12 = arith.addf %9, %11 : vector<128x128xf32>
    %c0_12 = arith.constant 0 : index
    %c0_13 = arith.constant 0 : index
    %13 = vector.load %arg8[%c0_12, %c0_13] : memref<128x1xf32, #tpu.memory_space<vmem>>, vector<128x1xf32>
    %cst_14 = arith.constant dense<0xFF800000> : vector<128xf32>
    %14 = vector.multi_reduction <maximumf>, %12, %cst_14 [1] : vector<128x128xf32> to vector<128xf32>
    %15 = vector.shape_cast %14 : vector<128xf32> to vector<128x1xf32>
    %16 = arith.maximumf %13, %15 : vector<128x1xf32>
    %17 = arith.subf %13, %16 : vector<128x1xf32>
    %18 = math.exp %17 : vector<128x1xf32>
    %19 = vector.broadcast %16 : vector<128x1xf32> to vector<128x128xf32>
    %20 = arith.subf %12, %19 : vector<128x128xf32>
    %21 = math.exp %20 : vector<128x128xf32>
    %c0_15 = arith.constant 0 : index
    %c0_16 = arith.constant 0 : index
    %22 = vector.load %arg9[%c0_15, %c0_16] : memref<128x1xf32, #tpu.memory_space<vmem>>, vector<128x1xf32>
    %23 = arith.mulf %18, %22 : vector<128x1xf32>
    %cst_17 = arith.constant dense<0.000000e+00> : vector<128xf32>
    %24 = vector.multi_reduction <add>, %21, %cst_17 [1] : vector<128x128xf32> to vector<128xf32>
    %25 = vector.shape_cast %24 : vector<128xf32> to vector<128x1xf32>
    %26 = arith.addf %23, %25 : vector<128x1xf32>
    %c0_18 = arith.constant 0 : index
    %c0_19 = arith.constant 0 : index
    %27 = vector.load %arg9[%c0_18, %c0_19] : memref<128x1xf32, #tpu.memory_space<vmem>>, vector<128x1xf32>
    tpu.vector_store %arg9[%c0_18, %c0_19], %26 {strides = array<i32>} : memref<128x1xf32, #tpu.memory_space<vmem>>, vector<128x1xf32>,
    %28 = arith.truncf %21 : vector<128x128xf32> to vector<128x128xbf16>
    %cst_20 = arith.constant dense<0.000000e+00> : vector<128x8xf32>
    %29 = tpu.matmul %28, %8, %cst_20 {dimension_numbers = #tpu.dot_dimension_numbers<[1], [0], [0], [1], [0, 0, 1, 1], [], []>} : vector<128x128xbf16>, vector<128x8xbf16>, vector<128x8xf32> -> vector<128x8xf32>
    %c0_21 = arith.constant 0 : index
    %c0_22 = arith.constant 0 : index
    %30 = vector.load %arg10[%c0_21, %c0_22] : memref<128x8xf32, #tpu.memory_space<vmem>>, vector<128x8xf32>
    %31 = vector.broadcast %18 : vector<128x1xf32> to vector<128x8xf32>
    %32 = arith.mulf %31, %30 : vector<128x8xf32>
    %33 = arith.addf %32, %29 : vector<128x8xf32>
    %c0_23 = arith.constant 0 : index
    %c0_24 = arith.constant 0 : index
    %34 = vector.load %arg10[%c0_23, %c0_24] : memref<128x8xf32, #tpu.memory_space<vmem>>, vector<128x8xf32>
    tpu.vector_store %arg10[%c0_23, %c0_24], %33 {strides = array<i32>} : memref<128x8xf32, #tpu.memory_space<vmem>>, vector<128x8xf32>,
    %c0_25 = arith.constant 0 : index
    %c0_26 = arith.constant 0 : index
    %35 = vector.load %arg8[%c0_25, %c0_26] : memref<128x1xf32, #tpu.memory_space<vmem>>, vector<128x1xf32>
    tpu.vector_store %arg8[%c0_25, %c0_26], %16 {strides = array<i32>} : memref<128x1xf32, #tpu.memory_space<vmem>>, vector<128x1xf32>,
    %c0_i32_27 = arith.constant 0 : i32
    %36 = arith.cmpi eq, %arg2, %c0_i32_27 : i32
    %37 = arith.extui %36 : i1 to i32
    %c0_i32_28 = arith.constant 0 : i32
    %38 = arith.cmpi ne, %37, %c0_i32_28 : i32
    scf.if %38 {
      %c0_29 = arith.constant 0 : index
      %c0_30 = arith.constant 0 : index
      %39 = vector.load %arg9[%c0_29, %c0_30] : memref<128x1xf32, #tpu.memory_space<vmem>>, vector<128x1xf32>
      %40 = tpu.reciprocal %39 {approx = true} : vector<128x1xf32> -> vector<128x1xf32>
      %c0_31 = arith.constant 0 : index
      %c0_32 = arith.constant 0 : index
      %41 = vector.load %arg10[%c0_31, %c0_32] : memref<128x8xf32, #tpu.memory_space<vmem>>, vector<128x8xf32>
      %42 = vector.broadcast %40 : vector<128x1xf32> to vector<128x8xf32>
      %43 = arith.mulf %41, %42 : vector<128x8xf32>
      %c0_33 = arith.constant 0 : index
      %c0_34 = arith.constant 0 : index
      %c0_35 = arith.constant 0 : index
      %44 = vector.load %arg7[%c0_33, %c0_34, %c0_35] : memref<1x128x8xf32, #tpu.memory_space<vmem>>, vector<1x128x8xf32>
      %45 = vector.shape_cast %44 : vector<1x128x8xf32> to vector<128x8xf32>
      %46 = vector.shape_cast %43 : vector<128x8xf32> to vector<1x128x8xf32>
      tpu.vector_store %arg7[%c0_33, %c0_34, %c0_35], %46 {strides = array<i32>} : memref<1x128x8xf32, #tpu.memory_space<vmem>>, vector<1x128x8xf32>,
    } else {
    }
    return
  }
  func.func @transform_0(%arg0: i32, %arg1: i32, %arg2: i32) -> (i32, i32, i32) {
    %c0_i32 = arith.constant 0 : i32
    %c0_i32_0 = arith.constant 0 : i32
    return %arg0, %arg1, %c0_i32 : i32, i32, i32
  }
  func.func @transform_1(%arg0: i32, %arg1: i32, %arg2: i32) -> (i32, i32, i32) {
    %c0_i32 = arith.constant 0 : i32
    %c0_i32_0 = arith.constant 0 : i32
    return %arg0, %arg2, %c0_i32 : i32, i32, i32
  }
  func.func @transform_2(%arg0: i32, %arg1: i32, %arg2: i32) -> (i32, i32, i32) {
    %c0_i32 = arith.constant 0 : i32
    %c0_i32_0 = arith.constant 0 : i32
    return %arg0, %arg2, %c0_i32 : i32, i32, i32
  }
  func.func @transform_3(%arg0: i32, %arg1: i32, %arg2: i32) -> (i32, i32, i32) {
    %c0_i32 = arith.constant 0 : i32
    return %arg0, %arg1, %arg2 : i32, i32, i32
  }
  func.func @transform_4(%arg0: i32, %arg1: i32, %arg2: i32) -> (i32, i32, i32) {
    %c0_i32 = arith.constant 0 : i32
    %c0_i32_0 = arith.constant 0 : i32
    return %arg0, %arg1, %c0_i32 : i32, i32, i32
  }
}

</mosaic_0001>

<llo_original>
// kernel: tpu_custom_call.1
$region0: #{tpu_custom_call.1}
  #allocation0 [shape = 'u32[]', space=smem, size = 0x4, offset = 0x4, fixed_abs, tag = 'smem constant byte address 0x4 - core index']
  #allocation1 [shape = 'u32[144,128]{1,0:T(1,128)}', space=vmem, size = 0x12000, scoped, tag = 'internal scratch']
  #allocation2 [shape = 'f32[128,1]{1,0:T(8,128)}', space=vmem, size = 0x10000, scoped, tag = 'scratch operand']
  #allocation3 [shape = 'f32[128,1]{1,0:T(8,128)}', space=vmem, size = 0x10000, scoped, tag = 'scratch operand']
  #allocation4 [shape = 'f32[128,8]{1,0:T(8,128)}', space=vmem, size = 0x10000, scoped, tag = 'scratch operand']
  %s0 = inlined_call_operand.vmem [shape: bf16[8,128,8], index: 0, kind: input, shape index: {}]
  %s1 = inlined_call_operand.vmem [shape: bf16[8,128,8], index: 1, kind: input, shape index: {}]
  %s2 = inlined_call_operand.vmem [shape: bf16[8,128,8], index: 2, kind: input, shape index: {}]
  %s3 = inlined_call_operand.vmem [shape: f32[8,128,128], index: 3, kind: input, shape index: {}]
  %s4 = inlined_call_operand.vmem [shape: f32[8,128,8], index: 4, kind: output, shape index: {}]
  %s5 = sld [smem:[#allocation0]]
  $region57: #{tpu_custom_call.1} parent=0
    _
  %s7 = ssub.s32 1, %s5
  %s8 = scalar_select 0, %s7, %s5
  loop: start=0, step=1, limit=10
  $region2: #{tpu_custom_call.1} parent=0 // loop_pre_header
    _
  $region3: #{tpu_custom_call.1} parent=0 // loop_header
    %s10 = sphi 0, %s14
    %p11 = scmp.ge.s32.totalorder %s10, 10
    %s17 = sphi 0, %s36
    %s18 = sphi 0, %s32
    %s19 = sphi 0, %s28
    %s20 = sphi 0, %s17
    %s21 = sphi 0, %s18
    %s22 = sphi 0, %s19
    %s23 = sphi 0, %s20
    %s24 = sphi 0, %s21
    %s25 = sphi 0, %s22
    %s41 = sphi 0, %s43
    %s44 = sphi 0, %s41
    %s45 = sphi 0, %s44
    %s61 = sphi 0, %s45
    %s69 = sphi 0, %s71
    %s72 = sphi 0, %s69
    %s73 = sphi 0, %s72
    %s89 = sphi 0, %s73
    %s97 = sphi 0, %s99
    %s100 = sphi 0, %s97
    %s101 = sphi 0, %s100
    %s117 = sphi 0, %s101
    %s127 = sphi 0, %s129
    %s130 = sphi 0, %s127
    %s131 = sphi 0, %s130
    %s147 = sphi 0, %s131
    %s155 = sphi 0, %s157
    %s158 = sphi 0, %s155
    %s159 = sphi 0, %s158
    %s175 = sphi 0, %s159
  $region4: #{tpu_custom_call.1} parent=0 // loop_header_branch
    %13 = sbr.rel (%p11) target = $region8
  $region5: #{tpu_custom_call.1} parent=0 // loop_body
    %s15 = ssub.s32 %s10, 1
    %s16 = ssub.s32 %s10, 2
    %s26 = sadd.s32 1, %s19
    %p27 = scmp.ge.s32.totalorder %s26, 1
    %s28 = scalar_select %p27, 0, %s26
    %s29 = sadd.s32 1, %s18
    %s30 = scalar_select %p27, %s29, %s18
    %p31 = scmp.ge.s32.totalorder %s30, 1
    %s32 = scalar_select %p31, 0, %s30
    %s33 = sadd.s32 1, %s17
    %s34 = scalar_select %p31, %s33, %s17
    %p35 = scmp.ge.s32.totalorder %s34, 8
    %s36 = scalar_select %p35, 0, %s34
    %s37 = ssub.s32 %s17, %s36
    %s38 = ssub.s32 %s18, %s32
    %s39 = sor.u32 %s37, %s38
    %p40 = scmp.eq.s32.totalorder %s39, 0
    %s42 = sadd.s32 %s41, 1
    %s43 = scalar_select %p40, %s41, %s42
    %p46 = pneg %p40
    %p47 = scmp.eq.s32.totalorder %s10, 7
    %p48 = por %p46, %p47
    %p49 = scmp.ne.s32.totalorder %s41, %s44
    %p50 = scmp.eq.s32.totalorder %s10, 0
    %p51 = por %p49, %p50
    %p52 = scmp.ne.s32.totalorder %s41, %s44
    %p53 = scmp.eq.s32.totalorder %s15, 7
    %p54 = por %p52, %p53
    %p55 = scmp.ne.s32.totalorder %s44, %s45
    %p56 = scmp.eq.s32.totalorder %s15, 0
    %p57 = por %p55, %p56
    %p58 = scmp.ne.s32.totalorder %s44, %s45
    %p59 = scmp.eq.s32.totalorder %s16, 7
    %p60 = por %p58, %p59
    %p62 = scmp.ne.s32.totalorder %s45, %s61
    %p63 = scmp.eq.s32.totalorder %s16, 0
    %p64 = por %p62, %p63
    %s65 = ssub.s32 %s17, %s36
    %s66 = ssub.s32 %s19, %s28
    %s67 = sor.u32 %s65, %s66
    %p68 = scmp.eq.s32.totalorder %s67, 0
    %s70 = sadd.s32 %s69, 1
    %s71 = scalar_select %p68, %s69, %s70
    %p74 = pneg %p68
    %p75 = scmp.eq.s32.totalorder %s10, 7
    %p76 = por %p74, %p75
    %p77 = scmp.ne.s32.totalorder %s69, %s72
    %p78 = scmp.eq.s32.totalorder %s10, 0
    %p79 = por %p77, %p78
    %p80 = scmp.ne.s32.totalorder %s69, %s72
    %p81 = scmp.eq.s32.totalorder %s15, 7
    %p82 = por %p80, %p81
    %p83 = scmp.ne.s32.totalorder %s72, %s73
    %p84 = scmp.eq.s32.totalorder %s15, 0
    %p85 = por %p83, %p84
    %p86 = scmp.ne.s32.totalorder %s72, %s73
    %p87 = scmp.eq.s32.totalorder %s16, 7
    %p88 = por %p86, %p87
    %p90 = scmp.ne.s32.totalorder %s73, %s89
    %p91 = scmp.eq.s32.totalorder %s16, 0
    %p92 = por %p90, %p91
    %s93 = ssub.s32 %s17, %s36
    %s94 = ssub.s32 %s19, %s28
    %s95 = sor.u32 %s93, %s94
    %p96 = scmp.eq.s32.totalorder %s95, 0
    %s98 = sadd.s32 %s97, 1
    %s99 = scalar_select %p96, %s97, %s98
    %p102 = pneg %p96
    %p103 = scmp.eq.s32.totalorder %s10, 7
    %p104 = por %p102, %p103
    %p105 = scmp.ne.s32.totalorder %s97, %s100
    %p106 = scmp.eq.s32.totalorder %s10, 0
    %p107 = por %p105, %p106
    %p108 = scmp.ne.s32.totalorder %s97, %s100
    %p109 = scmp.eq.s32.totalorder %s15, 7
    %p110 = por %p108, %p109
    %p111 = scmp.ne.s32.totalorder %s100, %s101
    %p112 = scmp.eq.s32.totalorder %s15, 0
    %p113 = por %p111, %p112
    %p114 = scmp.ne.s32.totalorder %s100, %s101
    %p115 = scmp.eq.s32.totalorder %s16, 7
    %p116 = por %p114, %p115
    %p118 = scmp.ne.s32.totalorder %s101, %s117
    %p119 = scmp.eq.s32.totalorder %s16, 0
    %p120 = por %p118, %p119
    %s121 = ssub.s32 %s17, %s36
    %s122 = ssub.s32 %s18, %s32
    %s123 = sor.u32 %s121, %s122
    %s124 = ssub.s32 %s19, %s28
    %s125 = sor.u32 %s123, %s124
    %p126 = scmp.eq.s32.totalorder %s125, 0
    %s128 = sadd.s32 %s127, 1
    %s129 = scalar_select %p126, %s127, %s128
    %p132 = pneg %p126
    %p133 = scmp.eq.s32.totalorder %s10, 7
    %p134 = por %p132, %p133
    %p135 = scmp.ne.s32.totalorder %s127, %s130
    %p136 = scmp.eq.s32.totalorder %s10, 0
    %p137 = por %p135, %p136
    %p138 = scmp.ne.s32.totalorder %s127, %s130
    %p139 = scmp.eq.s32.totalorder %s15, 7
    %p140 = por %p138, %p139
    %p141 = scmp.ne.s32.totalorder %s130, %s131
    %p142 = scmp.eq.s32.totalorder %s15, 0
    %p143 = por %p141, %p142
    %p144 = scmp.ne.s32.totalorder %s130, %s131
    %p145 = scmp.eq.s32.totalorder %s16, 7
    %p146 = por %p144, %p145
    %p148 = scmp.ne.s32.totalorder %s131, %s147
    %p149 = scmp.eq.s32.totalorder %s16, 0
    %p150 = por %p148, %p149
    %s151 = ssub.s32 %s17, %s36
    %s152 = ssub.s32 %s18, %s32
    %s153 = sor.u32 %s151, %s152
    %p154 = scmp.eq.s32.totalorder %s153, 0
    %s156 = sadd.s32 %s155, 1
    %s157 = scalar_select %p154, %s155, %s156
    %p160 = pneg %p154
    %p161 = scmp.eq.s32.totalorder %s10, 7
    %p162 = por %p160, %p161
    %p163 = scmp.ne.s32.totalorder %s155, %s158
    %p164 = scmp.eq.s32.totalorder %s10, 0
    %p165 = por %p163, %p164
    %p166 = scmp.ne.s32.totalorder %s155, %s158
    %p167 = scmp.eq.s32.totalorder %s15, 7
    %p168 = por %p166, %p167
    %p169 = scmp.ne.s32.totalorder %s158, %s159
    %p170 = scmp.eq.s32.totalorder %s15, 0
    %p171 = por %p169, %p170
    %p172 = scmp.ne.s32.totalorder %s158, %s159
    %p173 = scmp.eq.s32.totalorder %s16, 7
    %p174 = por %p172, %p173
    %p176 = scmp.ne.s32.totalorder %s159, %s175
    %p177 = scmp.eq.s32.totalorder %s16, 0
    %p178 = por %p176, %p177
    %p179 = scmp.le.s32.totalorder 1, %s10
    %p180 = scmp.lt.s32.totalorder %s10, 9
    %p181 = pnand %p179, %p180
    %p182 = pneg %p181
    // Predicated region
    $region9: #{tpu_custom_call.1} parent=5 // pred_check
      _
    $region10: #{tpu_custom_call.1} parent=5 // pred_check_branch
      %184 = sbr.rel (%p181) target = $region12
    $region11: #{tpu_custom_call.1} parent=5 // pred_region
      %s185 = ssub.s32 %s10, 1
    $region12: #{tpu_custom_call.1} parent=5 // pred_fallthru
      _
    %p186 = scmp.lt.s32.totalorder %s10, 8
    // Predicated region
    $region13: #{tpu_custom_call.1} parent=5 // pred_check
      %p187 = pneg %p186
    $region14: #{tpu_custom_call.1} parent=5 // pred_check_branch
      %189 = sbr.rel (%p187) target = $region16
    $region15: #{tpu_custom_call.1} parent=5 // pred_region
      // Predicated region
      $region17: #{tpu_custom_call.1} parent=15 // pred_check
        %p190 = pneg %p51
      $region18: #{tpu_custom_call.1} parent=15 // pred_check_branch
        %192 = sbr.rel (%p190) target = $region20
      $region19: #{tpu_custom_call.1} parent=15 // pred_region
        %s193 = smul.u32 16, %s18
        %p194 = scmp.lt.s32.totalorder %s17, 7
        %s195 = scalar_select %p194, %s17, 7
        %p196 = scmp.lt.s32.totalorder %s193, 15
        %s197 = scalar_select %p196, %s193, 15
        %s198 = smul.addr %s195, 16
        %s199 = sadd.s32 %s197, %s198
        %s200 = smul.addr %s199, 4
        %s201 = scalar_lea.vmem %s0, %s200
        %s202 = smul.u32 16, %s18
      $region20: #{tpu_custom_call.1} parent=15 // pred_fallthru
        _
      // Predicated region
      $region21: #{tpu_custom_call.1} parent=15 // pred_check
        %p203 = pneg %p79
      $region22: #{tpu_custom_call.1} parent=15 // pred_check_branch
        %205 = sbr.rel (%p203) target = $region24
      $region23: #{tpu_custom_call.1} parent=15 // pred_region
        %s206 = smul.u32 16, %s19
        %p207 = scmp.lt.s32.totalorder %s17, 7
        %s208 = scalar_select %p207, %s17, 7
        %p209 = scmp.lt.s32.totalorder %s206, 15
        %s210 = scalar_select %p209, %s206, 15
        %s211 = smul.addr %s208, 16
        %s212 = sadd.s32 %s210, %s211
        %s213 = smul.addr %s212, 4
        %s214 = scalar_lea.vmem %s1, %s213
        %s215 = smul.u32 16, %s19
      $region24: #{tpu_custom_call.1} parent=15 // pred_fallthru
        _
      // Predicated region
      $region25: #{tpu_custom_call.1} parent=15 // pred_check
        %p216 = pneg %p107
      $region26: #{tpu_custom_call.1} parent=15 // pred_check_branch
        %218 = sbr.rel (%p216) target = $region28
      $region27: #{tpu_custom_call.1} parent=15 // pred_region
        %s219 = smul.u32 16, %s19
        %p220 = scmp.lt.s32.totalorder %s17, 7
        %s221 = scalar_select %p220, %s17, 7
        %p222 = scmp.lt.s32.totalorder %s219, 15
        %s223 = scalar_select %p222, %s219, 15
        %s224 = smul.addr %s221, 16
        %s225 = sadd.s32 %s223, %s224
        %s226 = smul.addr %s225, 4
        %s227 = scalar_lea.vmem %s2, %s226
        %s228 = smul.u32 16, %s19
      $region28: #{tpu_custom_call.1} parent=15 // pred_fallthru
        _
      // Predicated region
      $region29: #{tpu_custom_call.1} parent=15 // pred_check
        %p229 = pneg %p137
      $region30: #{tpu_custom_call.1} parent=15 // pred_check_branch
        %231 = sbr.rel (%p229) target = $region32
      $region31: #{tpu_custom_call.1} parent=15 // pred_region
        %s232 = smul.u32 16, %s18
        %p233 = scmp.lt.s32.totalorder %s17, 7
        %s234 = scalar_select %p233, %s17, 7
        %p235 = scmp.lt.s32.totalorder %s232, 15
        %s236 = scalar_select %p235, %s232, 15
        %p237 = scmp.lt.s32.totalorder %s19, 0
        %s238 = scalar_select %p237, %s19, 0
        %s239 = sadd.s32 %s238, %s236
        %s240 = smul.addr %s234, 16
        %s241 = sadd.s32 %s239, %s240
        %s242 = smul.addr %s241, 8
        %s243 = scalar_lea.vmem %s3, %s242
        %s244 = smul.u32 16, %s18
      $region32: #{tpu_custom_call.1} parent=15 // pred_fallthru
        _
    $region16: #{tpu_custom_call.1} parent=5 // pred_fallthru
      _
    %p245 = scmp.le.s32.totalorder 1, %s10
    %p246 = scmp.lt.s32.totalorder %s10, 9
    %p247 = pnand %p245, %p246
    %p248 = pneg %p247
    // Predicated region
    $region33: #{tpu_custom_call.1} parent=5 // pred_check
      _
    $region34: #{tpu_custom_call.1} parent=5 // pred_check_branch
      %250 = sbr.rel (%p247) target = $region36
    $region35: #{tpu_custom_call.1} parent=5 // pred_region
      %s251 = ssub.s32 %s10, 1
      %s252 = smul.u32 16, %s21
      %p253 = scmp.lt.s32.totalorder %s20, 7
      %s254 = scalar_select %p253, %s20, 7
      %p255 = scmp.lt.s32.totalorder %s252, 15
      %s256 = scalar_select %p255, %s252, 15
      %s257 = smul.addr %s254, 16
      %s258 = sadd.s32 %s256, %s257
      %s259 = smul.addr %s258, 4
      %s260 = scalar_lea.vmem %s0, %s259
      %p261 = pneg %p57
      %p262 = pneg %p54
      %s263 = smul.u32 16, %s22
      %p264 = scmp.lt.s32.totalorder %s20, 7
      %s265 = scalar_select %p264, %s20, 7
      %p266 = scmp.lt.s32.totalorder %s263, 15
      %s267 = scalar_select %p266, %s263, 15
      %s268 = smul.addr %s265, 16
      %s269 = sadd.s32 %s267, %s268
      %s270 = smul.addr %s269, 4
      %s271 = scalar_lea.vmem %s1, %s270
      %p272 = pneg %p85
      %p273 = pneg %p82
      %s274 = smul.u32 16, %s22
      %p275 = scmp.lt.s32.totalorder %s20, 7
      %s276 = scalar_select %p275, %s20, 7
      %p277 = scmp.lt.s32.totalorder %s274, 15
      %s278 = scalar_select %p277, %s274, 15
      %s279 = smul.addr %s276, 16
      %s280 = sadd.s32 %s278, %s279
      %s281 = smul.addr %s280, 4
      %s282 = scalar_lea.vmem %s2, %s281
      %p283 = pneg %p113
      %p284 = pneg %p110
      %s285 = smul.u32 16, %s21
      %p286 = scmp.lt.s32.totalorder %s20, 7
      %s287 = scalar_select %p286, %s20, 7
      %p288 = scmp.lt.s32.totalorder %s285, 15
      %s289 = scalar_select %p288, %s285, 15
      %p290 = scmp.lt.s32.totalorder %s22, 0
      %s291 = scalar_select %p290, %s22, 0
      %s292 = sadd.s32 %s291, %s289
      %s293 = smul.addr %s287, 16
      %s294 = sadd.s32 %s292, %s293
      %s295 = smul.addr %s294, 8
      %s296 = scalar_lea.vmem %s3, %s295
      %p297 = pneg %p143
      %p298 = pneg %p140
      %p299 = pneg %p171
      %p300 = pneg %p168
      %s301 = smul.u32 16, %s21
      %p302 = scmp.lt.s32.totalorder %s20, 7
      %s303 = scalar_select %p302, %s20, 7
      %p304 = scmp.lt.s32.totalorder %s301, 15
      %s305 = scalar_select %p304, %s301, 15
      %s306 = smul.addr %s303, 16
      %s307 = sadd.s32 %s305, %s306
      %s308 = smul.addr %s307, 8
      %s309 = scalar_lea.vmem %s4, %s308
      %s310 = smul.u32 16, %s21
      %p311 = scmp.lt.s32.totalorder %s20, 7
      %s312 = scalar_select %p311, %s20, 7
      %p313 = scmp.lt.s32.totalorder %s310, 15
      %s314 = scalar_select %p313, %s310, 15
      %s315 = smul.addr %s312, 16
      %s316 = sadd.s32 %s314, %s315
      %s317 = smul.addr %s316, 4
      %s318 = scalar_lea.vmem %s0, %s317
      %s319 = smul.u32 16, %s21
      %s320 = smul.u32 16, %s22
      %p321 = scmp.lt.s32.totalorder %s20, 7
      %s322 = scalar_select %p321, %s20, 7
      %p323 = scmp.lt.s32.totalorder %s320, 15
      %s324 = scalar_select %p323, %s320, 15
      %s325 = smul.addr %s322, 16
      %s326 = sadd.s32 %s324, %s325
      %s327 = smul.addr %s326, 4
      %s328 = scalar_lea.vmem %s1, %s327
      %s329 = smul.u32 16, %s22
      %s330 = smul.u32 16, %s22
      %p331 = scmp.lt.s32.totalorder %s20, 7
      %s332 = scalar_select %p331, %s20, 7
      %p333 = scmp.lt.s32.totalorder %s330, 15
      %s334 = scalar_select %p333, %s330, 15
      %s335 = smul.addr %s332, 16
      %s336 = sadd.s32 %s334, %s335
      %s337 = smul.addr %s336, 4
      %s338 = scalar_lea.vmem %s2, %s337
      %s339 = smul.u32 16, %s22
      %s340 = smul.u32 16, %s21
      %p341 = scmp.lt.s32.totalorder %s20, 7
      %s342 = scalar_select %p341, %s20, 7
      %p343 = scmp.lt.s32.totalorder %s340, 15
      %s344 = scalar_select %p343, %s340, 15
      %p345 = scmp.lt.s32.totalorder %s22, 0
      %s346 = scalar_select %p345, %s22, 0
      %s347 = sadd.s32 %s346, %s344
      %s348 = smul.addr %s342, 16
      %s349 = sadd.s32 %s347, %s348
      %s350 = smul.addr %s349, 8
      %s351 = scalar_lea.vmem %s3, %s350
      %s352 = smul.u32 16, %s21
      %s353 = smul.u32 16, %s21
      %p354 = scmp.lt.s32.totalorder %s20, 7
      %s355 = scalar_select %p354, %s20, 7
      %p356 = scmp.lt.s32.totalorder %s353, 15
      %s357 = scalar_select %p356, %s353, 15
      %s358 = smul.addr %s355, 16
      %s359 = sadd.s32 %s357, %s358
      %s360 = smul.addr %s359, 8
      %s361 = scalar_lea.vmem %s4, %s360
      %s362 = smul.u32 16, %s21
      %p364 = scmp.eq.s32.totalorder %s22, 0
      // Predicated region
      $region37: #{tpu_custom_call.1} parent=35 // pred_check
        %p365 = pneg %p364
      $region38: #{tpu_custom_call.1} parent=35 // pred_check_branch
        %367 = sbr.rel (%p365) target = $region40
      $region39: #{tpu_custom_call.1} parent=35 // pred_region
        %vm368 = vcmask 7168
        %369 = vst.msk [vmem:[#allocation2] sm:$0xff] %vm368, -inf
        %370 = vst.msk [vmem:[#allocation2 + $0x8] sm:$0xff] %vm368, -inf
        %371 = vst.msk [vmem:[#allocation2 + $0x10] sm:$0xff] %vm368, -inf
        %372 = vst.msk [vmem:[#allocation2 + $0x18] sm:$0xff] %vm368, -inf
        %373 = vst.msk [vmem:[#allocation2 + $0x20] sm:$0xff] %vm368, -inf
        %374 = vst.msk [vmem:[#allocation2 + $0x28] sm:$0xff] %vm368, -inf
        %375 = vst.msk [vmem:[#allocation2 + $0x30] sm:$0xff] %vm368, -inf
        %376 = vst.msk [vmem:[#allocation2 + $0x38] sm:$0xff] %vm368, -inf
        %377 = vst.msk [vmem:[#allocation2 + $0x40] sm:$0xff] %vm368, -inf
        %378 = vst.msk [vmem:[#allocation2 + $0x48] sm:$0xff] %vm368, -inf
        %379 = vst.msk [vmem:[#allocation2 + $0x50] sm:$0xff] %vm368, -inf
        %380 = vst.msk [vmem:[#allocation2 + $0x58] sm:$0xff] %vm368, -inf
        %381 = vst.msk [vmem:[#allocation2 + $0x60] sm:$0xff] %vm368, -inf
        %382 = vst.msk [vmem:[#allocation2 + $0x68] sm:$0xff] %vm368, -inf
        %383 = vst.msk [vmem:[#allocation2 + $0x70] sm:$0xff] %vm368, -inf
        %384 = vst.msk [vmem:[#allocation2 + $0x78] sm:$0xff] %vm368, -inf
        %385 = vst.msk [vmem:[#allocation3] sm:$0xff] %vm368, 0.0
        %386 = vst.msk [vmem:[#allocation3 + $0x8] sm:$0xff] %vm368, 0.0
        %387 = vst.msk [vmem:[#allocation3 + $0x10] sm:$0xff] %vm368, 0.0
        %388 = vst.msk [vmem:[#allocation3 + $0x18] sm:$0xff] %vm368, 0.0
        %389 = vst.msk [vmem:[#allocation3 + $0x20] sm:$0xff] %vm368, 0.0
        %390 = vst.msk [vmem:[#allocation3 + $0x28] sm:$0xff] %vm368, 0.0
        %391 = vst.msk [vmem:[#allocation3 + $0x30] sm:$0xff] %vm368, 0.0
        %392 = vst.msk [vmem:[#allocation3 + $0x38] sm:$0xff] %vm368, 0.0
        %393 = vst.msk [vmem:[#allocation3 + $0x40] sm:$0xff] %vm368, 0.0
        %394 = vst.msk [vmem:[#allocation3 + $0x48] sm:$0xff] %vm368, 0.0
        %395 = vst.msk [vmem:[#allocation3 + $0x50] sm:$0xff] %vm368, 0.0
        %396 = vst.msk [vmem:[#allocation3 + $0x58] sm:$0xff] %vm368, 0.0
        %397 = vst.msk [vmem:[#allocation3 + $0x60] sm:$0xff] %vm368, 0.0
        %398 = vst.msk [vmem:[#allocation3 + $0x68] sm:$0xff] %vm368, 0.0
        %399 = vst.msk [vmem:[#allocation3 + $0x70] sm:$0xff] %vm368, 0.0
        %400 = vst.msk [vmem:[#allocation3 + $0x78] sm:$0xff] %vm368, 0.0
        %vm401 = vcmask 64512
        %402 = vst.msk [vmem:[#allocation4] sm:$0xff] %vm401, 0.0
        %403 = vst.msk [vmem:[#allocation4 + $0x8] sm:$0xff] %vm401, 0.0
        %404 = vst.msk [vmem:[#allocation4 + $0x10] sm:$0xff] %vm401, 0.0
        %405 = vst.msk [vmem:[#allocation4 + $0x18] sm:$0xff] %vm401, 0.0
        %406 = vst.msk [vmem:[#allocation4 + $0x20] sm:$0xff] %vm401, 0.0
        %407 = vst.msk [vmem:[#allocation4 + $0x28] sm:$0xff] %vm401, 0.0
        %408 = vst.msk [vmem:[#allocation4 + $0x30] sm:$0xff] %vm401, 0.0
        %409 = vst.msk [vmem:[#allocation4 + $0x38] sm:$0xff] %vm401, 0.0
        %410 = vst.msk [vmem:[#allocation4 + $0x40] sm:$0xff] %vm401, 0.0
        %411 = vst.msk [vmem:[#allocation4 + $0x48] sm:$0xff] %vm401, 0.0
        %412 = vst.msk [vmem:[#allocation4 + $0x50] sm:$0xff] %vm401, 0.0
        %413 = vst.msk [vmem:[#allocation4 + $0x58] sm:$0xff] %vm401, 0.0
        %414 = vst.msk [vmem:[#allocation4 + $0x60] sm:$0xff] %vm401, 0.0
        %415 = vst.msk [vmem:[#allocation4 + $0x68] sm:$0xff] %vm401, 0.0
        %416 = vst.msk [vmem:[#allocation4 + $0x70] sm:$0xff] %vm401, 0.0
        %417 = vst.msk [vmem:[#allocation4 + $0x78] sm:$0xff] %vm401, 0.0
      $region40: #{tpu_custom_call.1} parent=35 // pred_fallthru
        _
      %v418 = vld [vmem:[%s318] sm:$0xf]
      %v419 = vld [vmem:[%s318 + $0x4] sm:$0xf]
      %v420 = vld [vmem:[%s318 + $0x8] sm:$0xf]
      %v421 = vld [vmem:[%s318 + $0xc] sm:$0xf]
      %v422 = vld [vmem:[%s318 + $0x10] sm:$0xf]
      %v423 = vld [vmem:[%s318 + $0x14] sm:$0xf]
      %v424 = vld [vmem:[%s318 + $0x18] sm:$0xf]
      %v425 = vld [vmem:[%s318 + $0x1c] sm:$0xf]
      %v426 = vld [vmem:[%s318 + $0x20] sm:$0xf]
      %v427 = vld [vmem:[%s318 + $0x24] sm:$0xf]
      %v428 = vld [vmem:[%s318 + $0x28] sm:$0xf]
      %v429 = vld [vmem:[%s318 + $0x2c] sm:$0xf]
      %v430 = vld [vmem:[%s318 + $0x30] sm:$0xf]
      %v431 = vld [vmem:[%s318 + $0x34] sm:$0xf]
      %v432 = vld [vmem:[%s318 + $0x38] sm:$0xf]
      %v433 = vld [vmem:[%s318 + $0x3c] sm:$0xf]
      %v434 = vld [vmem:[%s328] sm:$0xf]
      %v435 = vld [vmem:[%s328 + $0x4] sm:$0xf]
      %v436 = vld [vmem:[%s328 + $0x8] sm:$0xf]
      %v437 = vld [vmem:[%s328 + $0xc] sm:$0xf]
      %v438 = vld [vmem:[%s328 + $0x10] sm:$0xf]
      %v439 = vld [vmem:[%s328 + $0x14] sm:$0xf]
      %v440 = vld [vmem:[%s328 + $0x18] sm:$0xf]
      %v441 = vld [vmem:[%s328 + $0x1c] sm:$0xf]
      %v442 = vld [vmem:[%s328 + $0x20] sm:$0xf]
      %v443 = vld [vmem:[%s328 + $0x24] sm:$0xf]
      %v444 = vld [vmem:[%s328 + $0x28] sm:$0xf]
      %v445 = vld [vmem:[%s328 + $0x2c] sm:$0xf]
      %v446 = vld [vmem:[%s328 + $0x30] sm:$0xf]
      %v447 = vld [vmem:[%s328 + $0x34] sm:$0xf]
      %v448 = vld [vmem:[%s328 + $0x38] sm:$0xf]
      %v449 = vld [vmem:[%s328 + $0x3c] sm:$0xf]
      %v450 = vld [vmem:[%s338] sm:$0xf]
      %v451 = vld [vmem:[%s338 + $0x4] sm:$0xf]
      %v452 = vld [vmem:[%s338 + $0x8] sm:$0xf]
      %v453 = vld [vmem:[%s338 + $0xc] sm:$0xf]
      %v454 = vld [vmem:[%s338 + $0x10] sm:$0xf]
      %v455 = vld [vmem:[%s338 + $0x14] sm:$0xf]
      %v456 = vld [vmem:[%s338 + $0x18] sm:$0xf]
      %v457 = vld [vmem:[%s338 + $0x1c] sm:$0xf]
      %v458 = vld [vmem:[%s338 + $0x20] sm:$0xf]
      %v459 = vld [vmem:[%s338 + $0x24] sm:$0xf]
      %v460 = vld [vmem:[%s338 + $0x28] sm:$0xf]
      %v461 = vld [vmem:[%s338 + $0x2c] sm:$0xf]
      %v462 = vld [vmem:[%s338 + $0x30] sm:$0xf]
      %v463 = vld [vmem:[%s338 + $0x34] sm:$0xf]
      %v464 = vld [vmem:[%s338 + $0x38] sm:$0xf]
      %v465 = vld [vmem:[%s338 + $0x3c] sm:$0xf]
      %v466 = vld [vmem:[%s351] sm:$0xff]
      %v467 = vld [vmem:[%s351 + $0x8] sm:$0xff]
      %v468 = vld [vmem:[%s351 + $0x10] sm:$0xff]
      %v469 = vld [vmem:[%s351 + $0x18] sm:$0xff]
      %v470 = vld [vmem:[%s351 + $0x20] sm:$0xff]
      %v471 = vld [vmem:[%s351 + $0x28] sm:$0xff]
      %v472 = vld [vmem:[%s351 + $0x30] sm:$0xff]
      %v473 = vld [vmem:[%s351 + $0x38] sm:$0xff]
      %v474 = vld [vmem:[%s351 + $0x40] sm:$0xff]
      %v475 = vld [vmem:[%s351 + $0x48] sm:$0xff]
      %v476 = vld [vmem:[%s351 + $0x50] sm:$0xff]
      %v477 = vld [vmem:[%s351 + $0x58] sm:$0xff]
      %v478 = vld [vmem:[%s351 + $0x60] sm:$0xff]
      %v479 = vld [vmem:[%s351 + $0x68] sm:$0xff]
      %v480 = vld [vmem:[%s351 + $0x70] sm:$0xff]
      %v481 = vld [vmem:[%s351 + $0x78] sm:$0xff]
      %v498 = vunpack.c.l.b16 %v418
      %v499 = vunpack.c.l.b16 %v419
      %v500 = vunpack.c.l.b16 %v420
      %v501 = vunpack.c.l.b16 %v421
      %v502 = vunpack.c.l.b16 %v422
      %v503 = vunpack.c.l.b16 %v423
      %v504 = vunpack.c.l.b16 %v424
      %v505 = vunpack.c.l.b16 %v425
      %v506 = vunpack.c.l.b16 %v426
      %v507 = vunpack.c.l.b16 %v427
      %v508 = vunpack.c.l.b16 %v428
      %v509 = vunpack.c.l.b16 %v429
      %v510 = vunpack.c.l.b16 %v430
      %v511 = vunpack.c.l.b16 %v431
      %v512 = vunpack.c.l.b16 %v432
      %v513 = vunpack.c.l.b16 %v433
      %v514 = vpack.c.b16 %v499, %v498
      %v515 = vpack.c.b16 %v501, %v500
      %v516 = vpack.c.b16 %v503, %v502
      %v517 = vpack.c.b16 %v505, %v504
      %v518 = vpack.c.b16 %v507, %v506
      %v519 = vpack.c.b16 %v509, %v508
      %v520 = vpack.c.b16 %v511, %v510
      %v521 = vpack.c.b16 %v513, %v512
      %v538 = vunpack.c.l.b16 %v434
      %v539 = vunpack.c.l.b16 %v435
      %v540 = vunpack.c.l.b16 %v436
      %v541 = vunpack.c.l.b16 %v437
      %v542 = vunpack.c.l.b16 %v438
      %v543 = vunpack.c.l.b16 %v439
      %v544 = vunpack.c.l.b16 %v440
      %v545 = vunpack.c.l.b16 %v441
      %v546 = vunpack.c.l.b16 %v442
      %v547 = vunpack.c.l.b16 %v443
      %v548 = vunpack.c.l.b16 %v444
      %v549 = vunpack.c.l.b16 %v445
      %v550 = vunpack.c.l.b16 %v446
      %v551 = vunpack.c.l.b16 %v447
      %v552 = vunpack.c.l.b16 %v448
      %v553 = vunpack.c.l.b16 %v449
      %v554 = vpack.c.b16 %v539, %v538
      %v555 = vpack.c.b16 %v541, %v540
      %v556 = vpack.c.b16 %v543, %v542
      %v557 = vpack.c.b16 %v545, %v544
      %v558 = vpack.c.b16 %v547, %v546
      %v559 = vpack.c.b16 %v549, %v548
      %v560 = vpack.c.b16 %v551, %v550
      %v561 = vpack.c.b16 %v553, %v552
      %vm562 = vcmask 64512
      %v564 = vsel %vm562, %v514, 0
      %v567 = vsel %vm562, %v515, 0
      %v570 = vsel %vm562, %v516, 0
      %v573 = vsel %vm562, %v517, 0
      %v576 = vsel %vm562, %v518, 0
      %v579 = vsel %vm562, %v519, 0
      %v582 = vsel %vm562, %v520, 0
      %v585 = vsel %vm562, %v521, 0
      %v588 = vsel %vm562, %v554, 0
      %v591 = vsel %vm562, %v555, 0
      %v594 = vsel %vm562, %v556, 0
      %v597 = vsel %vm562, %v557, 0
      %v600 = vsel %vm562, %v558, 0
      %v603 = vsel %vm562, %v559, 0
      %v606 = vsel %vm562, %v560, 0
      %v609 = vsel %vm562, %v561, 0
      %611 = vmatprep.subr.bf16.mxu0 0
      %612 = vmatpush1.bf16.xpose.msra.mxu0 %v588
      %613 = vmatprep.subr.bf16.mxu0 0
      %614 = vmatpush1.bf16.xpose.msra.mxu0 %v591
      %615 = vmatprep.subr.bf16.mxu0 0
      %616 = vmatpush1.bf16.xpose.msra.mxu0 %v594
      %617 = vmatprep.subr.bf16.mxu0 0
      %618 = vmatpush1.bf16.xpose.msra.mxu0 %v597
      %619 = vmatprep.subr.bf16.mxu0 0
      %620 = vmatpush1.bf16.xpose.msra.mxu0 %v600
      %621 = vmatprep.subr.bf16.mxu0 0
      %622 = vmatpush1.bf16.xpose.msra.mxu0 %v603
      %623 = vmatprep.subr.bf16.mxu0 0
      %624 = vmatpush1.bf16.xpose.msra.mxu0 %v606
      %625 = vmatprep.subr.bf16.mxu0 0
      %626 = vmatpush1.bf16.xpose.msra.mxu0 %v609
      %627 = vmatprep.subr.bf16.mxu0 0
      %628 = vmatpush1.bf16.xpose.msra.mxu0 0
      %629 = vmatprep.subr.bf16.mxu0 0
      %630 = vmatpush1.bf16.xpose.msra.mxu0 0
      %631 = vmatprep.subr.bf16.mxu0 0
      %632 = vmatpush1.bf16.xpose.msra.mxu0 0
      %633 = vmatprep.subr.bf16.mxu0 0
      %634 = vmatpush1.bf16.xpose.msra.mxu0 0
      %635 = vmatprep.subr.bf16.mxu0 0
      %636 = vmatpush1.bf16.xpose.msra.mxu0 0
      %637 = vmatprep.subr.bf16.mxu0 0
      %638 = vmatpush1.bf16.xpose.msra.mxu0 0
      %639 = vmatprep.subr.bf16.mxu0 0
      %640 = vmatpush1.bf16.xpose.msra.mxu0 0
      %641 = vmatprep.subr.bf16.mxu0 0
      %642 = vmatpush1.bf16.xpose.msra.mxu0 0
      %643 = vmatprep.mubr.bf16.mxu0 0
      %644 = vmatmul.mubr.bf16.gmra.mrb[0].mxu0 %v564
      %v645 = vpop.f32.mrb[0].mxu0
      %v646 = vadd.f32 %v466, %v645
      %v647 = vpop.f32.mrb[0].mxu0
      %v648 = vpop.f32.mrb[0].mxu0
      %v649 = vadd.f32 %v467, %v648
      %v650 = vpop.f32.mrb[0].mxu0
      %651 = vmatprep.mubr.bf16.mxu0 0
      %652 = vmatmul.mubr.bf16.gmra.mrb[0].mxu0 %v567
      %v653 = vpop.f32.mrb[0].mxu0
      %v654 = vadd.f32 %v468, %v653
      %v655 = vpop.f32.mrb[0].mxu0
      %v656 = vpop.f32.mrb[0].mxu0
      %v657 = vadd.f32 %v469, %v656
      %v658 = vpop.f32.mrb[0].mxu0
      %659 = vmatprep.mubr.bf16.mxu0 0
      %660 = vmatmul.mubr.bf16.gmra.mrb[0].mxu0 %v570
      %v661 = vpop.f32.mrb[0].mxu0
      %v662 = vadd.f32 %v470, %v661
      %v663 = vpop.f32.mrb[0].mxu0
      %v664 = vpop.f32.mrb[0].mxu0
      %v665 = vadd.f32 %v471, %v664
      %v666 = vpop.f32.mrb[0].mxu0
      %667 = vmatprep.mubr.bf16.mxu0 0
      %668 = vmatmul.mubr.bf16.gmra.mrb[0].mxu0 %v573
      %v669 = vpop.f32.mrb[0].mxu0
      %v670 = vadd.f32 %v472, %v669
      %v671 = vpop.f32.mrb[0].mxu0
      %v672 = vpop.f32.mrb[0].mxu0
      %v673 = vadd.f32 %v473, %v672
      %v674 = vpop.f32.mrb[0].mxu0
      %675 = vmatprep.mubr.bf16.mxu0 0
      %676 = vmatmul.mubr.bf16.gmra.mrb[0].mxu0 %v576
      %v677 = vpop.f32.mrb[0].mxu0
      %v678 = vadd.f32 %v474, %v677
      %v679 = vpop.f32.mrb[0].mxu0
      %v680 = vpop.f32.mrb[0].mxu0
      %v681 = vadd.f32 %v475, %v680
      %v682 = vpop.f32.mrb[0].mxu0
      %683 = vmatprep.mubr.bf16.mxu0 0
      %684 = vmatmul.mubr.bf16.gmra.mrb[0].mxu0 %v579
      %v685 = vpop.f32.mrb[0].mxu0
      %v686 = vadd.f32 %v476, %v685
      %v687 = vpop.f32.mrb[0].mxu0
      %v688 = vpop.f32.mrb[0].mxu0
      %v689 = vadd.f32 %v477, %v688
      %v690 = vpop.f32.mrb[0].mxu0
      %691 = vmatprep.mubr.bf16.mxu0 0
      %692 = vmatmul.mubr.bf16.gmra.mrb[0].mxu0 %v582
      %v693 = vpop.f32.mrb[0].mxu0
      %v694 = vadd.f32 %v478, %v693
      %v695 = vpop.f32.mrb[0].mxu0
      %v696 = vpop.f32.mrb[0].mxu0
      %v697 = vadd.f32 %v479, %v696
      %v698 = vpop.f32.mrb[0].mxu0
      %699 = vmatprep.mubr.bf16.mxu0 0
      %700 = vmatmul.mubr.bf16.gmra.mrb[0].mxu0 %v585
      %v701 = vpop.f32.mrb[0].mxu0
      %v702 = vadd.f32 %v480, %v701
      %v703 = vpop.f32.mrb[0].mxu0
      %v704 = vpop.f32.mrb[0].mxu0
      %v705 = vadd.f32 %v481, %v704
      %v706 = vpop.f32.mrb[0].mxu0
      %707 = vdwg.mxu0
      %v708 = vld [vmem:[#allocation2] sm:$0xff]
      %v709 = vld [vmem:[#allocation2 + $0x8] sm:$0xff]
      %v710 = vld [vmem:[#allocation2 + $0x10] sm:$0xff]
      %v711 = vld [vmem:[#allocation2 + $0x18] sm:$0xff]
      %v712 = vld [vmem:[#allocation2 + $0x20] sm:$0xff]
      %v713 = vld [vmem:[#allocation2 + $0x28] sm:$0xff]
      %v714 = vld [vmem:[#allocation2 + $0x30] sm:$0xff]
      %v715 = vld [vmem:[#allocation2 + $0x38] sm:$0xff]
      %v716 = vld [vmem:[#allocation2 + $0x40] sm:$0xff]
      %v717 = vld [vmem:[#allocation2 + $0x48] sm:$0xff]
      %v718 = vld [vmem:[#allocation2 + $0x50] sm:$0xff]
      %v719 = vld [vmem:[#allocation2 + $0x58] sm:$0xff]
      %v720 = vld [vmem:[#allocation2 + $0x60] sm:$0xff]
      %v721 = vld [vmem:[#allocation2 + $0x68] sm:$0xff]
      %v722 = vld [vmem:[#allocation2 + $0x70] sm:$0xff]
      %v723 = vld [vmem:[#allocation2 + $0x78] sm:$0xff]
      %724 = vmax.xlane.f32.xlu0 %v646
      %v725 = vpop.xlane.xlu0 %724
      %726 = vmax.xlane.f32.xlu0 %v649
      %v727 = vpop.xlane.xlu0 %726
      %728 = vmax.xlane.f32.xlu0 %v654
      %v729 = vpop.xlane.xlu0 %728
      %730 = vmax.xlane.f32.xlu0 %v657
      %v731 = vpop.xlane.xlu0 %730
      %732 = vmax.xlane.f32.xlu0 %v662
      %v733 = vpop.xlane.xlu0 %732
      %734 = vmax.xlane.f32.xlu0 %v665
      %v735 = vpop.xlane.xlu0 %734
      %736 = vmax.xlane.f32.xlu0 %v670
      %v737 = vpop.xlane.xlu0 %736
      %738 = vmax.xlane.f32.xlu0 %v673
      %v739 = vpop.xlane.xlu0 %738
      %740 = vmax.xlane.f32.xlu0 %v678
      %v741 = vpop.xlane.xlu0 %740
      %742 = vmax.xlane.f32.xlu0 %v681
      %v743 = vpop.xlane.xlu0 %742
      %744 = vmax.xlane.f32.xlu0 %v686
      %v745 = vpop.xlane.xlu0 %744
      %746 = vmax.xlane.f32.xlu0 %v689
      %v747 = vpop.xlane.xlu0 %746
      %748 = vmax.xlane.f32.xlu0 %v694
      %v749 = vpop.xlane.xlu0 %748
      %750 = vmax.xlane.f32.xlu0 %v697
      %v751 = vpop.xlane.xlu0 %750
      %752 = vmax.xlane.f32.xlu0 %v702
      %v753 = vpop.xlane.xlu0 %752
      %754 = vmax.xlane.f32.xlu0 %v705
      %v755 = vpop.xlane.xlu0 %754
      %v756 = vmax.f32 %v708, %v725
      %v757 = vmax.f32 %v709, %v727
      %v758 = vmax.f32 %v710, %v729
      %v759 = vmax.f32 %v711, %v731
      %v760 = vmax.f32 %v712, %v733
      %v761 = vmax.f32 %v713, %v735
      %v762 = vmax.f32 %v714, %v737
      %v763 = vmax.f32 %v715, %v739
      %v764 = vmax.f32 %v716, %v741
      %v765 = vmax.f32 %v717, %v743
      %v766 = vmax.f32 %v718, %v745
      %v767 = vmax.f32 %v719, %v747
      %v768 = vmax.f32 %v720, %v749
      %v769 = vmax.f32 %v721, %v751
      %v770 = vmax.f32 %v722, %v753
      %v771 = vmax.f32 %v723, %v755
      %v772 = vsub.f32 %v708, %v756
      %v773 = vsub.f32 %v709, %v757
      %v774 = vsub.f32 %v710, %v758
      %v775 = vsub.f32 %v711, %v759
      %v776 = vsub.f32 %v712, %v760
      %v777 = vsub.f32 %v713, %v761
      %v778 = vsub.f32 %v714, %v762
      %v779 = vsub.f32 %v715, %v763
      %v780 = vsub.f32 %v716, %v764
      %v781 = vsub.f32 %v717, %v765
      %v782 = vsub.f32 %v718, %v766
      %v783 = vsub.f32 %v719, %v767
      %v784 = vsub.f32 %v720, %v768
      %v785 = vsub.f32 %v721, %v769
      %v786 = vsub.f32 %v722, %v770
      %v787 = vsub.f32 %v723, %v771
      %v788 = vmul.f32 %v772, 1.442695
      %v789 = vpow.pop %v788
      %v790 = vmul.f32 %v773, 1.442695
      %v791 = vpow.pop %v790
      %v792 = vmul.f32 %v774, 1.442695
      %v793 = vpow.pop %v792
      %v794 = vmul.f32 %v775, 1.442695
      %v795 = vpow.pop %v794
      %v796 = vmul.f32 %v776, 1.442695
      %v797 = vpow.pop %v796
      %v798 = vmul.f32 %v777, 1.442695
      %v799 = vpow.pop %v798
      %v800 = vmul.f32 %v778, 1.442695
      %v801 = vpow.pop %v800
      %v802 = vmul.f32 %v779, 1.442695
      %v803 = vpow.pop %v802
      %v804 = vmul.f32 %v780, 1.442695
      %v805 = vpow.pop %v804
      %v806 = vmul.f32 %v781, 1.442695
      %v807 = vpow.pop %v806
      %v808 = vmul.f32 %v782, 1.442695
      %v809 = vpow.pop %v808
      %v810 = vmul.f32 %v783, 1.442695
      %v811 = vpow.pop %v810
      %v812 = vmul.f32 %v784, 1.442695
      %v813 = vpow.pop %v812
      %v814 = vmul.f32 %v785, 1.442695
      %v815 = vpow.pop %v814
      %v816 = vmul.f32 %v786, 1.442695
      %v817 = vpow.pop %v816
      %v818 = vmul.f32 %v787, 1.442695
      %v819 = vpow.pop %v818
      %821 = vset.pattern.permute.xlu0 0
      %822 = vperm.xlu0 %821, %v756
      %v823 = vpop.permute.xlu0 %822
      %826 = vset.pattern.permute.xlu0 0
      %827 = vperm.xlu0 %826, %v757
      %v828 = vpop.permute.xlu0 %827
      %831 = vset.pattern.permute.xlu0 0
      %832 = vperm.xlu0 %831, %v758
      %v833 = vpop.permute.xlu0 %832
      %836 = vset.pattern.permute.xlu0 0
      %837 = vperm.xlu0 %836, %v759
      %v838 = vpop.permute.xlu0 %837
      %841 = vset.pattern.permute.xlu0 0
      %842 = vperm.xlu0 %841, %v760
      %v843 = vpop.permute.xlu0 %842
      %846 = vset.pattern.permute.xlu0 0
      %847 = vperm.xlu0 %846, %v761
      %v848 = vpop.permute.xlu0 %847
      %851 = vset.pattern.permute.xlu0 0
      %852 = vperm.xlu0 %851, %v762
      %v853 = vpop.permute.xlu0 %852
      %856 = vset.pattern.permute.xlu0 0
      %857 = vperm.xlu0 %856, %v763
      %v858 = vpop.permute.xlu0 %857
      %861 = vset.pattern.permute.xlu0 0
      %862 = vperm.xlu0 %861, %v764
      %v863 = vpop.permute.xlu0 %862
      %866 = vset.pattern.permute.xlu0 0
      %867 = vperm.xlu0 %866, %v765
      %v868 = vpop.permute.xlu0 %867
      %871 = vset.pattern.permute.xlu0 0
      %872 = vperm.xlu0 %871, %v766
      %v873 = vpop.permute.xlu0 %872
      %876 = vset.pattern.permute.xlu0 0
      %877 = vperm.xlu0 %876, %v767
      %v878 = vpop.permute.xlu0 %877
      %881 = vset.pattern.permute.xlu0 0
      %882 = vperm.xlu0 %881, %v768
      %v883 = vpop.permute.xlu0 %882
      %886 = vset.pattern.permute.xlu0 0
      %887 = vperm.xlu0 %886, %v769
      %v888 = vpop.permute.xlu0 %887
      %891 = vset.pattern.permute.xlu0 0
      %892 = vperm.xlu0 %891, %v770
      %v893 = vpop.permute.xlu0 %892
      %896 = vset.pattern.permute.xlu0 0
      %897 = vperm.xlu0 %896, %v771
      %v898 = vpop.permute.xlu0 %897
      %v900 = vsub.f32 %v646, %v823
      %v901 = vsub.f32 %v649, %v828
      %v902 = vsub.f32 %v654, %v833
      %v903 = vsub.f32 %v657, %v838
      %v904 = vsub.f32 %v662, %v843
      %v905 = vsub.f32 %v665, %v848
      %v906 = vsub.f32 %v670, %v853
      %v907 = vsub.f32 %v673, %v858
      %v908 = vsub.f32 %v678, %v863
      %v909 = vsub.f32 %v681, %v868
      %v910 = vsub.f32 %v686, %v873
      %v911 = vsub.f32 %v689, %v878
      %v912 = vsub.f32 %v694, %v883
      %v913 = vsub.f32 %v697, %v888
      %v914 = vsub.f32 %v702, %v893
      %v915 = vsub.f32 %v705, %v898
      %v916 = vmul.f32 %v900, 1.442695
      %v917 = vpow.pop %v916
      %v918 = vmul.f32 %v901, 1.442695
      %v919 = vpow.pop %v918
      %v920 = vmul.f32 %v902, 1.442695
      %v921 = vpow.pop %v920
      %v922 = vmul.f32 %v903, 1.442695
      %v923 = vpow.pop %v922
      %v924 = vmul.f32 %v904, 1.442695
      %v925 = vpow.pop %v924
      %v926 = vmul.f32 %v905, 1.442695
      %v927 = vpow.pop %v926
      %v928 = vmul.f32 %v906, 1.442695
      %v929 = vpow.pop %v928
      %v930 = vmul.f32 %v907, 1.442695
      %v931 = vpow.pop %v930
      %v932 = vmul.f32 %v908, 1.442695
      %v933 = vpow.pop %v932
      %v934 = vmul.f32 %v909, 1.442695
      %v935 = vpow.pop %v934
      %v936 = vmul.f32 %v910, 1.442695
      %v937 = vpow.pop %v936
      %v938 = vmul.f32 %v911, 1.442695
      %v939 = vpow.pop %v938
      %v940 = vmul.f32 %v912, 1.442695
      %v941 = vpow.pop %v940
      %v942 = vmul.f32 %v913, 1.442695
      %v943 = vpow.pop %v942
      %v944 = vmul.f32 %v914, 1.442695
      %v945 = vpow.pop %v944
      %v946 = vmul.f32 %v915, 1.442695
      %v947 = vpow.pop %v946
      %v948 = vld [vmem:[#allocation3] sm:$0xff]
      %v949 = vld [vmem:[#allocation3 + $0x8] sm:$0xff]
      %v950 = vld [vmem:[#allocation3 + $0x10] sm:$0xff]
      %v951 = vld [vmem:[#allocation3 + $0x18] sm:$0xff]
      %v952 = vld [vmem:[#allocation3 + $0x20] sm:$0xff]
      %v953 = vld [vmem:[#allocation3 + $0x28] sm:$0xff]
      %v954 = vld [vmem:[#allocation3 + $0x30] sm:$0xff]
      %v955 = vld [vmem:[#allocation3 + $0x38] sm:$0xff]
      %v956 = vld [vmem:[#allocation3 + $0x40] sm:$0xff]
      %v957 = vld [vmem:[#allocation3 + $0x48] sm:$0xff]
      %v958 = vld [vmem:[#allocation3 + $0x50] sm:$0xff]
      %v959 = vld [vmem:[#allocation3 + $0x58] sm:$0xff]
      %v960 = vld [vmem:[#allocation3 + $0x60] sm:$0xff]
      %v961 = vld [vmem:[#allocation3 + $0x68] sm:$0xff]
      %v962 = vld [vmem:[#allocation3 + $0x70] sm:$0xff]
      %v963 = vld [vmem:[#allocation3 + $0x78] sm:$0xff]
      %v964 = vmul.f32 %v789, %v948
      %v965 = vmul.f32 %v791, %v949
      %v966 = vmul.f32 %v793, %v950
      %v967 = vmul.f32 %v795, %v951
      %v968 = vmul.f32 %v797, %v952
      %v969 = vmul.f32 %v799, %v953
      %v970 = vmul.f32 %v801, %v954
      %v971 = vmul.f32 %v803, %v955
      %v972 = vmul.f32 %v805, %v956
      %v973 = vmul.f32 %v807, %v957
      %v974 = vmul.f32 %v809, %v958
      %v975 = vmul.f32 %v811, %v959
      %v976 = vmul.f32 %v813, %v960
      %v977 = vmul.f32 %v815, %v961
      %v978 = vmul.f32 %v817, %v962
      %v979 = vmul.f32 %v819, %v963
      %980 = vadd.xlane.f32.xlu0 %v917
      %v981 = vpop.xlane.xlu0 %980
      %982 = vadd.xlane.f32.xlu0 %v919
      %v983 = vpop.xlane.xlu0 %982
      %984 = vadd.xlane.f32.xlu0 %v921
      %v985 = vpop.xlane.xlu0 %984
      %986 = vadd.xlane.f32.xlu0 %v923
      %v987 = vpop.xlane.xlu0 %986
      %988 = vadd.xlane.f32.xlu0 %v925
      %v989 = vpop.xlane.xlu0 %988
      %990 = vadd.xlane.f32.xlu0 %v927
      %v991 = vpop.xlane.xlu0 %990
      %992 = vadd.xlane.f32.xlu0 %v929
      %v993 = vpop.xlane.xlu0 %992
      %994 = vadd.xlane.f32.xlu0 %v931
      %v995 = vpop.xlane.xlu0 %994
      %996 = vadd.xlane.f32.xlu0 %v933
      %v997 = vpop.xlane.xlu0 %996
      %998 = vadd.xlane.f32.xlu0 %v935
      %v999 = vpop.xlane.xlu0 %998
      %1000 = vadd.xlane.f32.xlu0 %v937
      %v1001 = vpop.xlane.xlu0 %1000
      %1002 = vadd.xlane.f32.xlu0 %v939
      %v1003 = vpop.xlane.xlu0 %1002
      %1004 = vadd.xlane.f32.xlu0 %v941
      %v1005 = vpop.xlane.xlu0 %1004
      %1006 = vadd.xlane.f32.xlu0 %v943
      %v1007 = vpop.xlane.xlu0 %1006
      %1008 = vadd.xlane.f32.xlu0 %v945
      %v1009 = vpop.xlane.xlu0 %1008
      %1010 = vadd.xlane.f32.xlu0 %v947
      %v1011 = vpop.xlane.xlu0 %1010
      %v1012 = vadd.f32 %v964, %v981
      %v1013 = vadd.f32 %v965, %v983
      %v1014 = vadd.f32 %v966, %v985
      %v1015 = vadd.f32 %v967, %v987
      %v1016 = vadd.f32 %v968, %v989
      %v1017 = vadd.f32 %v969, %v991
      %v1018 = vadd.f32 %v970, %v993
      %v1019 = vadd.f32 %v971, %v995
      %v1020 = vadd.f32 %v972, %v997
      %v1021 = vadd.f32 %v973, %v999
      %v1022 = vadd.f32 %v974, %v1001
      %v1023 = vadd.f32 %v975, %v1003
      %v1024 = vadd.f32 %v976, %v1005
      %v1025 = vadd.f32 %v977, %v1007
      %v1026 = vadd.f32 %v978, %v1009
      %v1027 = vadd.f32 %v979, %v1011
      %vm1028 = vcmask 7168
      %1029 = vst.msk [vmem:[#allocation3] sm:$0xff] %vm1028, %v1012
      %1030 = vst.msk [vmem:[#allocation3 + $0x8] sm:$0xff] %vm1028, %v1013
      %1031 = vst.msk [vmem:[#allocation3 + $0x10] sm:$0xff] %vm1028, %v1014
      %1032 = vst.msk [vmem:[#allocation3 + $0x18] sm:$0xff] %vm1028, %v1015
      %1033 = vst.msk [vmem:[#allocation3 + $0x20] sm:$0xff] %vm1028, %v1016
      %1034 = vst.msk [vmem:[#allocation3 + $0x28] sm:$0xff] %vm1028, %v1017
      %1035 = vst.msk [vmem:[#allocation3 + $0x30] sm:$0xff] %vm1028, %v1018
      %1036 = vst.msk [vmem:[#allocation3 + $0x38] sm:$0xff] %vm1028, %v1019
      %1037 = vst.msk [vmem:[#allocation3 + $0x40] sm:$0xff] %vm1028, %v1020
      %1038 = vst.msk [vmem:[#allocation3 + $0x48] sm:$0xff] %vm1028, %v1021
      %1039 = vst.msk [vmem:[#allocation3 + $0x50] sm:$0xff] %vm1028, %v1022
      %1040 = vst.msk [vmem:[#allocation3 + $0x58] sm:$0xff] %vm1028, %v1023
      %1041 = vst.msk [vmem:[#allocation3 + $0x60] sm:$0xff] %vm1028, %v1024
      %1042 = vst.msk [vmem:[#allocation3 + $0x68] sm:$0xff] %vm1028, %v1025
      %1043 = vst.msk [vmem:[#allocation3 + $0x70] sm:$0xff] %vm1028, %v1026
      %1044 = vst.msk [vmem:[#allocation3 + $0x78] sm:$0xff] %vm1028, %v1027
      %v1045 = vpack.c.bf16 %v919, %v917
      %v1046 = vpack.c.bf16 %v923, %v921
      %v1047 = vpack.c.bf16 %v927, %v925
      %v1048 = vpack.c.bf16 %v931, %v929
      %v1049 = vpack.c.bf16 %v935, %v933
      %v1050 = vpack.c.bf16 %v939, %v937
      %v1051 = vpack.c.bf16 %v943, %v941
      %v1052 = vpack.c.bf16 %v947, %v945
      %v1069 = vunpack.c.l.b16 %v450
      %v1070 = vunpack.c.l.b16 %v451
      %v1071 = vunpack.c.l.b16 %v452
      %v1072 = vunpack.c.l.b16 %v453
      %v1073 = vunpack.c.l.b16 %v454
      %v1074 = vunpack.c.l.b16 %v455
      %v1075 = vunpack.c.l.b16 %v456
      %v1076 = vunpack.c.l.b16 %v457
      %v1077 = vunpack.c.l.b16 %v458
      %v1078 = vunpack.c.l.b16 %v459
      %v1079 = vunpack.c.l.b16 %v460
      %v1080 = vunpack.c.l.b16 %v461
      %v1081 = vunpack.c.l.b16 %v462
      %v1082 = vunpack.c.l.b16 %v463
      %v1083 = vunpack.c.l.b16 %v464
      %v1084 = vunpack.c.l.b16 %v465
      %v1085 = vpack.c.b16 %v1070, %v1069
      %v1086 = vpack.c.b16 %v1072, %v1071
      %v1087 = vpack.c.b16 %v1074, %v1073
      %v1088 = vpack.c.b16 %v1076, %v1075
      %v1089 = vpack.c.b16 %v1078, %v1077
      %v1090 = vpack.c.b16 %v1080, %v1079
      %v1091 = vpack.c.b16 %v1082, %v1081
      %v1092 = vpack.c.b16 %v1084, %v1083
      %1101 = vmatprep.subr.bf16.mxu0 0
      %1102 = vmatpush1.bf16.msra.mxu0 %v1085
      %1103 = vmatprep.subr.bf16.mxu0 0
      %1104 = vmatpush1.bf16.msra.mxu0 %v1086
      %1105 = vmatprep.subr.bf16.mxu0 0
      %1106 = vmatpush1.bf16.msra.mxu0 %v1087
      %1107 = vmatprep.subr.bf16.mxu0 0
      %1108 = vmatpush1.bf16.msra.mxu0 %v1088
      %1109 = vmatprep.subr.bf16.mxu0 0
      %1110 = vmatpush1.bf16.msra.mxu0 %v1089
      %1111 = vmatprep.subr.bf16.mxu0 0
      %1112 = vmatpush1.bf16.msra.mxu0 %v1090
      %1113 = vmatprep.subr.bf16.mxu0 0
      %1114 = vmatpush1.bf16.msra.mxu0 %v1091
      %1115 = vmatprep.subr.bf16.mxu0 0
      %1116 = vmatpush1.bf16.msra.mxu0 %v1092
      %1117 = vmatprep.subr.bf16.mxu0 0
      %1118 = vmatpush1.bf16.msra.mxu0 0
      %1119 = vmatprep.subr.bf16.mxu0 0
      %1120 = vmatpush1.bf16.msra.mxu0 0
      %1121 = vmatprep.subr.bf16.mxu0 0
      %1122 = vmatpush1.bf16.msra.mxu0 0
      %1123 = vmatprep.subr.bf16.mxu0 0
      %1124 = vmatpush1.bf16.msra.mxu0 0
      %1125 = vmatprep.subr.bf16.mxu0 0
      %1126 = vmatpush1.bf16.msra.mxu0 0
      %1127 = vmatprep.subr.bf16.mxu0 0
      %1128 = vmatpush1.bf16.msra.mxu0 0
      %1129 = vmatprep.subr.bf16.mxu0 0
      %1130 = vmatpush1.bf16.msra.mxu0 0
      %1131 = vmatprep.subr.bf16.mxu0 0
      %1132 = vmatpush1.bf16.msra.mxu0 0
      %1133 = vmatprep.mubr.bf16.mxu0 0
      %1134 = vmatmul.mubr.bf16.gmra.mrb[0].mxu0 %v1045
      %v1135 = vpop.f32.mrb[0].mxu0
      %v1136 = vadd.f32 0.0, %v1135
      %v1137 = vpop.f32.mrb[0].mxu0
      %v1138 = vpop.f32.mrb[0].mxu0
      %v1139 = vadd.f32 0.0, %v1138
      %v1140 = vpop.f32.mrb[0].mxu0
      %1141 = vmatprep.mubr.bf16.mxu0 0
      %1142 = vmatmul.mubr.bf16.gmra.mrb[0].mxu0 %v1046
      %v1143 = vpop.f32.mrb[0].mxu0
      %v1144 = vadd.f32 0.0, %v1143
      %v1145 = vpop.f32.mrb[0].mxu0
      %v1146 = vpop.f32.mrb[0].mxu0
      %v1147 = vadd.f32 0.0, %v1146
      %v1148 = vpop.f32.mrb[0].mxu0
      %1149 = vmatprep.mubr.bf16.mxu0 0
      %1150 = vmatmul.mubr.bf16.gmra.mrb[0].mxu0 %v1047
      %v1151 = vpop.f32.mrb[0].mxu0
      %v1152 = vadd.f32 0.0, %v1151
      %v1153 = vpop.f32.mrb[0].mxu0
      %v1154 = vpop.f32.mrb[0].mxu0
      %v1155 = vadd.f32 0.0, %v1154
      %v1156 = vpop.f32.mrb[0].mxu0
      %1157 = vmatprep.mubr.bf16.mxu0 0
      %1158 = vmatmul.mubr.bf16.gmra.mrb[0].mxu0 %v1048
      %v1159 = vpop.f32.mrb[0].mxu0
      %v1160 = vadd.f32 0.0, %v1159
      %v1161 = vpop.f32.mrb[0].mxu0
      %v1162 = vpop.f32.mrb[0].mxu0
      %v1163 = vadd.f32 0.0, %v1162
      %v1164 = vpop.f32.mrb[0].mxu0
      %1165 = vmatprep.mubr.bf16.mxu0 0
      %1166 = vmatmul.mubr.bf16.gmra.mrb[0].mxu0 %v1049
      %v1167 = vpop.f32.mrb[0].mxu0
      %v1168 = vadd.f32 0.0, %v1167
      %v1169 = vpop.f32.mrb[0].mxu0
      %v1170 = vpop.f32.mrb[0].mxu0
      %v1171 = vadd.f32 0.0, %v1170
      %v1172 = vpop.f32.mrb[0].mxu0
      %1173 = vmatprep.mubr.bf16.mxu0 0
      %1174 = vmatmul.mubr.bf16.gmra.mrb[0].mxu0 %v1050
      %v1175 = vpop.f32.mrb[0].mxu0
      %v1176 = vadd.f32 0.0, %v1175
      %v1177 = vpop.f32.mrb[0].mxu0
      %v1178 = vpop.f32.mrb[0].mxu0
      %v1179 = vadd.f32 0.0, %v1178
      %v1180 = vpop.f32.mrb[0].mxu0
      %1181 = vmatprep.mubr.bf16.mxu0 0
      %1182 = vmatmul.mubr.bf16.gmra.mrb[0].mxu0 %v1051
      %v1183 = vpop.f32.mrb[0].mxu0
      %v1184 = vadd.f32 0.0, %v1183
      %v1185 = vpop.f32.mrb[0].mxu0
      %v1186 = vpop.f32.mrb[0].mxu0
      %v1187 = vadd.f32 0.0, %v1186
      %v1188 = vpop.f32.mrb[0].mxu0
      %1189 = vmatprep.mubr.bf16.mxu0 0
      %1190 = vmatmul.mubr.bf16.gmra.mrb[0].mxu0 %v1052
      %v1191 = vpop.f32.mrb[0].mxu0
      %v1192 = vadd.f32 0.0, %v1191
      %v1193 = vpop.f32.mrb[0].mxu0
      %v1194 = vpop.f32.mrb[0].mxu0
      %v1195 = vadd.f32 0.0, %v1194
      %v1196 = vpop.f32.mrb[0].mxu0
      %1197 = vdwg.mxu0
      %v1198 = vld [vmem:[#allocation4] sm:$0xff]
      %v1199 = vld [vmem:[#allocation4 + $0x8] sm:$0xff]
      %v1200 = vld [vmem:[#allocation4 + $0x10] sm:$0xff]
      %v1201 = vld [vmem:[#allocation4 + $0x18] sm:$0xff]
      %v1202 = vld [vmem:[#allocation4 + $0x20] sm:$0xff]
      %v1203 = vld [vmem:[#allocation4 + $0x28] sm:$0xff]
      %v1204 = vld [vmem:[#allocation4 + $0x30] sm:$0xff]
      %v1205 = vld [vmem:[#allocation4 + $0x38] sm:$0xff]
      %v1206 = vld [vmem:[#allocation4 + $0x40] sm:$0xff]
      %v1207 = vld [vmem:[#allocation4 + $0x48] sm:$0xff]
      %v1208 = vld [vmem:[#allocation4 + $0x50] sm:$0xff]
      %v1209 = vld [vmem:[#allocation4 + $0x58] sm:$0xff]
      %v1210 = vld [vmem:[#allocation4 + $0x60] sm:$0xff]
      %v1211 = vld [vmem:[#allocation4 + $0x68] sm:$0xff]
      %v1212 = vld [vmem:[#allocation4 + $0x70] sm:$0xff]
      %v1213 = vld [vmem:[#allocation4 + $0x78] sm:$0xff]
      %1215 = vset.pattern.permute.xlu0 0
      %1216 = vperm.xlu0 %1215, %v789
      %v1217 = vpop.permute.xlu0 %1216
      %1220 = vset.pattern.permute.xlu0 0
      %1221 = vperm.xlu0 %1220, %v791
      %v1222 = vpop.permute.xlu0 %1221
      %1225 = vset.pattern.permute.xlu0 0
      %1226 = vperm.xlu0 %1225, %v793
      %v1227 = vpop.permute.xlu0 %1226
      %1230 = vset.pattern.permute.xlu0 0
      %1231 = vperm.xlu0 %1230, %v795
      %v1232 = vpop.permute.xlu0 %1231
      %1235 = vset.pattern.permute.xlu0 0
      %1236 = vperm.xlu0 %1235, %v797
      %v1237 = vpop.permute.xlu0 %1236
      %1240 = vset.pattern.permute.xlu0 0
      %1241 = vperm.xlu0 %1240, %v799
      %v1242 = vpop.permute.xlu0 %1241
      %1245 = vset.pattern.permute.xlu0 0
      %1246 = vperm.xlu0 %1245, %v801
      %v1247 = vpop.permute.xlu0 %1246
      %1250 = vset.pattern.permute.xlu0 0
      %1251 = vperm.xlu0 %1250, %v803
      %v1252 = vpop.permute.xlu0 %1251
      %1255 = vset.pattern.permute.xlu0 0
      %1256 = vperm.xlu0 %1255, %v805
      %v1257 = vpop.permute.xlu0 %1256
      %1260 = vset.pattern.permute.xlu0 0
      %1261 = vperm.xlu0 %1260, %v807
      %v1262 = vpop.permute.xlu0 %1261
      %1265 = vset.pattern.permute.xlu0 0
      %1266 = vperm.xlu0 %1265, %v809
      %v1267 = vpop.permute.xlu0 %1266
      %1270 = vset.pattern.permute.xlu0 0
      %1271 = vperm.xlu0 %1270, %v811
      %v1272 = vpop.permute.xlu0 %1271
      %1275 = vset.pattern.permute.xlu0 0
      %1276 = vperm.xlu0 %1275, %v813
      %v1277 = vpop.permute.xlu0 %1276
      %1280 = vset.pattern.permute.xlu0 0
      %1281 = vperm.xlu0 %1280, %v815
      %v1282 = vpop.permute.xlu0 %1281
      %1285 = vset.pattern.permute.xlu0 0
      %1286 = vperm.xlu0 %1285, %v817
      %v1287 = vpop.permute.xlu0 %1286
      %1290 = vset.pattern.permute.xlu0 0
      %1291 = vperm.xlu0 %1290, %v819
      %v1292 = vpop.permute.xlu0 %1291
      %v1294 = vmul.f32 %v1217, %v1198
      %v1295 = vmul.f32 %v1222, %v1199
      %v1296 = vmul.f32 %v1227, %v1200
      %v1297 = vmul.f32 %v1232, %v1201
      %v1298 = vmul.f32 %v1237, %v1202
      %v1299 = vmul.f32 %v1242, %v1203
      %v1300 = vmul.f32 %v1247, %v1204
      %v1301 = vmul.f32 %v1252, %v1205
      %v1302 = vmul.f32 %v1257, %v1206
      %v1303 = vmul.f32 %v1262, %v1207
      %v1304 = vmul.f32 %v1267, %v1208
      %v1305 = vmul.f32 %v1272, %v1209
      %v1306 = vmul.f32 %v1277, %v1210
      %v1307 = vmul.f32 %v1282, %v1211
      %v1308 = vmul.f32 %v1287, %v1212
      %v1309 = vmul.f32 %v1292, %v1213
      %v1310 = vadd.f32 %v1294, %v1136
      %v1311 = vadd.f32 %v1295, %v1139
      %v1312 = vadd.f32 %v1296, %v1144
      %v1313 = vadd.f32 %v1297, %v1147
      %v1314 = vadd.f32 %v1298, %v1152
      %v1315 = vadd.f32 %v1299, %v1155
      %v1316 = vadd.f32 %v1300, %v1160
      %v1317 = vadd.f32 %v1301, %v1163
      %v1318 = vadd.f32 %v1302, %v1168
      %v1319 = vadd.f32 %v1303, %v1171
      %v1320 = vadd.f32 %v1304, %v1176
      %v1321 = vadd.f32 %v1305, %v1179
      %v1322 = vadd.f32 %v1306, %v1184
      %v1323 = vadd.f32 %v1307, %v1187
      %v1324 = vadd.f32 %v1308, %v1192
      %v1325 = vadd.f32 %v1309, %v1195
      %1326 = vst.msk [vmem:[#allocation4] sm:$0xff] %vm562, %v1310
      %1327 = vst.msk [vmem:[#allocation4 + $0x8] sm:$0xff] %vm562, %v1311
      %1328 = vst.msk [vmem:[#allocation4 + $0x10] sm:$0xff] %vm562, %v1312
      %1329 = vst.msk [vmem:[#allocation4 + $0x18] sm:$0xff] %vm562, %v1313
      %1330 = vst.msk [vmem:[#allocation4 + $0x20] sm:$0xff] %vm562, %v1314
      %1331 = vst.msk [vmem:[#allocation4 + $0x28] sm:$0xff] %vm562, %v1315
      %1332 = vst.msk [vmem:[#allocation4 + $0x30] sm:$0xff] %vm562, %v1316
      %1333 = vst.msk [vmem:[#allocation4 + $0x38] sm:$0xff] %vm562, %v1317
      %1334 = vst.msk [vmem:[#allocation4 + $0x40] sm:$0xff] %vm562, %v1318
      %1335 = vst.msk [vmem:[#allocation4 + $0x48] sm:$0xff] %vm562, %v1319
      %1336 = vst.msk [vmem:[#allocation4 + $0x50] sm:$0xff] %vm562, %v1320
      %1337 = vst.msk [vmem:[#allocation4 + $0x58] sm:$0xff] %vm562, %v1321
      %1338 = vst.msk [vmem:[#allocation4 + $0x60] sm:$0xff] %vm562, %v1322
      %1339 = vst.msk [vmem:[#allocation4 + $0x68] sm:$0xff] %vm562, %v1323
      %1340 = vst.msk [vmem:[#allocation4 + $0x70] sm:$0xff] %vm562, %v1324
      %1341 = vst.msk [vmem:[#allocation4 + $0x78] sm:$0xff] %vm562, %v1325
      %1342 = vst.msk [vmem:[#allocation2] sm:$0xff] %vm1028, %v756
      %1343 = vst.msk [vmem:[#allocation2 + $0x8] sm:$0xff] %vm1028, %v757
      %1344 = vst.msk [vmem:[#allocation2 + $0x10] sm:$0xff] %vm1028, %v758
      %1345 = vst.msk [vmem:[#allocation2 + $0x18] sm:$0xff] %vm1028, %v759
      %1346 = vst.msk [vmem:[#allocation2 + $0x20] sm:$0xff] %vm1028, %v760
      %1347 = vst.msk [vmem:[#allocation2 + $0x28] sm:$0xff] %vm1028, %v761
      %1348 = vst.msk [vmem:[#allocation2 + $0x30] sm:$0xff] %vm1028, %v762
      %1349 = vst.msk [vmem:[#allocation2 + $0x38] sm:$0xff] %vm1028, %v763
      %1350 = vst.msk [vmem:[#allocation2 + $0x40] sm:$0xff] %vm1028, %v764
      %1351 = vst.msk [vmem:[#allocation2 + $0x48] sm:$0xff] %vm1028, %v765
      %1352 = vst.msk [vmem:[#allocation2 + $0x50] sm:$0xff] %vm1028, %v766
      %1353 = vst.msk [vmem:[#allocation2 + $0x58] sm:$0xff] %vm1028, %v767
      %1354 = vst.msk [vmem:[#allocation2 + $0x60] sm:$0xff] %vm1028, %v768
      %1355 = vst.msk [vmem:[#allocation2 + $0x68] sm:$0xff] %vm1028, %v769
      %1356 = vst.msk [vmem:[#allocation2 + $0x70] sm:$0xff] %vm1028, %v770
      %1357 = vst.msk [vmem:[#allocation2 + $0x78] sm:$0xff] %vm1028, %v771
      // Predicated region
      $region41: #{tpu_custom_call.1} parent=35 // pred_check
        %p1358 = pneg %p364
      $region42: #{tpu_custom_call.1} parent=35 // pred_check_branch
        %1360 = sbr.rel (%p1358) target = $region44
      $region43: #{tpu_custom_call.1} parent=35 // pred_region
        %v1361 = vld [vmem:[#allocation3] sm:$0xff]
        %v1362 = vld [vmem:[#allocation3 + $0x8] sm:$0xff]
        %v1363 = vld [vmem:[#allocation3 + $0x10] sm:$0xff]
        %v1364 = vld [vmem:[#allocation3 + $0x18] sm:$0xff]
        %v1365 = vld [vmem:[#allocation3 + $0x20] sm:$0xff]
        %v1366 = vld [vmem:[#allocation3 + $0x28] sm:$0xff]
        %v1367 = vld [vmem:[#allocation3 + $0x30] sm:$0xff]
        %v1368 = vld [vmem:[#allocation3 + $0x38] sm:$0xff]
        %v1369 = vld [vmem:[#allocation3 + $0x40] sm:$0xff]
        %v1370 = vld [vmem:[#allocation3 + $0x48] sm:$0xff]
        %v1371 = vld [vmem:[#allocation3 + $0x50] sm:$0xff]
        %v1372 = vld [vmem:[#allocation3 + $0x58] sm:$0xff]
        %v1373 = vld [vmem:[#allocation3 + $0x60] sm:$0xff]
        %v1374 = vld [vmem:[#allocation3 + $0x68] sm:$0xff]
        %v1375 = vld [vmem:[#allocation3 + $0x70] sm:$0xff]
        %v1376 = vld [vmem:[#allocation3 + $0x78] sm:$0xff]
        %v1377 = vrcp.pop %v1361
        %v1378 = vrcp.pop %v1362
        %v1379 = vrcp.pop %v1363
        %v1380 = vrcp.pop %v1364
        %v1381 = vrcp.pop %v1365
        %v1382 = vrcp.pop %v1366
        %v1383 = vrcp.pop %v1367
        %v1384 = vrcp.pop %v1368
        %v1385 = vrcp.pop %v1369
        %v1386 = vrcp.pop %v1370
        %v1387 = vrcp.pop %v1371
        %v1388 = vrcp.pop %v1372
        %v1389 = vrcp.pop %v1373
        %v1390 = vrcp.pop %v1374
        %v1391 = vrcp.pop %v1375
        %v1392 = vrcp.pop %v1376
        %v1393 = vld [vmem:[#allocation4] sm:$0xff]
        %v1394 = vld [vmem:[#allocation4 + $0x8] sm:$0xff]
        %v1395 = vld [vmem:[#allocation4 + $0x10] sm:$0xff]
        %v1396 = vld [vmem:[#allocation4 + $0x18] sm:$0xff]
        %v1397 = vld [vmem:[#allocation4 + $0x20] sm:$0xff]
        %v1398 = vld [vmem:[#allocation4 + $0x28] sm:$0xff]
        %v1399 = vld [vmem:[#allocation4 + $0x30] sm:$0xff]
        %v1400 = vld [vmem:[#allocation4 + $0x38] sm:$0xff]
        %v1401 = vld [vmem:[#allocation4 + $0x40] sm:$0xff]
        %v1402 = vld [vmem:[#allocation4 + $0x48] sm:$0xff]
        %v1403 = vld [vmem:[#allocation4 + $0x50] sm:$0xff]
        %v1404 = vld [vmem:[#allocation4 + $0x58] sm:$0xff]
        %v1405 = vld [vmem:[#allocation4 + $0x60] sm:$0xff]
        %v1406 = vld [vmem:[#allocation4 + $0x68] sm:$0xff]
        %v1407 = vld [vmem:[#allocation4 + $0x70] sm:$0xff]
        %v1408 = vld [vmem:[#allocation4 + $0x78] sm:$0xff]
        %1410 = vset.pattern.permute.xlu0 0
        %1411 = vperm.xlu0 %1410, %v1377
        %v1412 = vpop.permute.xlu0 %1411
        %1415 = vset.pattern.permute.xlu0 0
        %1416 = vperm.xlu0 %1415, %v1378
        %v1417 = vpop.permute.xlu0 %1416
        %1420 = vset.pattern.permute.xlu0 0
        %1421 = vperm.xlu0 %1420, %v1379
        %v1422 = vpop.permute.xlu0 %1421
        %1425 = vset.pattern.permute.xlu0 0
        %1426 = vperm.xlu0 %1425, %v1380
        %v1427 = vpop.permute.xlu0 %1426
        %1430 = vset.pattern.permute.xlu0 0
        %1431 = vperm.xlu0 %1430, %v1381
        %v1432 = vpop.permute.xlu0 %1431
        %1435 = vset.pattern.permute.xlu0 0
        %1436 = vperm.xlu0 %1435, %v1382
        %v1437 = vpop.permute.xlu0 %1436
        %1440 = vset.pattern.permute.xlu0 0
        %1441 = vperm.xlu0 %1440, %v1383
        %v1442 = vpop.permute.xlu0 %1441
        %1445 = vset.pattern.permute.xlu0 0
        %1446 = vperm.xlu0 %1445, %v1384
        %v1447 = vpop.permute.xlu0 %1446
        %1450 = vset.pattern.permute.xlu0 0
        %1451 = vperm.xlu0 %1450, %v1385
        %v1452 = vpop.permute.xlu0 %1451
        %1455 = vset.pattern.permute.xlu0 0
        %1456 = vperm.xlu0 %1455, %v1386
        %v1457 = vpop.permute.xlu0 %1456
        %1460 = vset.pattern.permute.xlu0 0
        %1461 = vperm.xlu0 %1460, %v1387
        %v1462 = vpop.permute.xlu0 %1461
        %1465 = vset.pattern.permute.xlu0 0
        %1466 = vperm.xlu0 %1465, %v1388
        %v1467 = vpop.permute.xlu0 %1466
        %1470 = vset.pattern.permute.xlu0 0
        %1471 = vperm.xlu0 %1470, %v1389
        %v1472 = vpop.permute.xlu0 %1471
        %1475 = vset.pattern.permute.xlu0 0
        %1476 = vperm.xlu0 %1475, %v1390
        %v1477 = vpop.permute.xlu0 %1476
        %1480 = vset.pattern.permute.xlu0 0
        %1481 = vperm.xlu0 %1480, %v1391
        %v1482 = vpop.permute.xlu0 %1481
        %1485 = vset.pattern.permute.xlu0 0
        %1486 = vperm.xlu0 %1485, %v1392
        %v1487 = vpop.permute.xlu0 %1486
        %v1489 = vmul.f32 %v1393, %v1412
        %v1490 = vmul.f32 %v1394, %v1417
        %v1491 = vmul.f32 %v1395, %v1422
        %v1492 = vmul.f32 %v1396, %v1427
        %v1493 = vmul.f32 %v1397, %v1432
        %v1494 = vmul.f32 %v1398, %v1437
        %v1495 = vmul.f32 %v1399, %v1442
        %v1496 = vmul.f32 %v1400, %v1447
        %v1497 = vmul.f32 %v1401, %v1452
        %v1498 = vmul.f32 %v1402, %v1457
        %v1499 = vmul.f32 %v1403, %v1462
        %v1500 = vmul.f32 %v1404, %v1467
        %v1501 = vmul.f32 %v1405, %v1472
        %v1502 = vmul.f32 %v1406, %v1477
        %v1503 = vmul.f32 %v1407, %v1482
        %v1504 = vmul.f32 %v1408, %v1487
        %1505 = vst.msk [vmem:[%s361] sm:$0xff] %vm562, %v1489
        %1506 = vst.msk [vmem:[%s361 + $0x8] sm:$0xff] %vm562, %v1490
        %1507 = vst.msk [vmem:[%s361 + $0x10] sm:$0xff] %vm562, %v1491
        %1508 = vst.msk [vmem:[%s361 + $0x18] sm:$0xff] %vm562, %v1492
        %1509 = vst.msk [vmem:[%s361 + $0x20] sm:$0xff] %vm562, %v1493
        %1510 = vst.msk [vmem:[%s361 + $0x28] sm:$0xff] %vm562, %v1494
        %1511 = vst.msk [vmem:[%s361 + $0x30] sm:$0xff] %vm562, %v1495
        %1512 = vst.msk [vmem:[%s361 + $0x38] sm:$0xff] %vm562, %v1496
        %1513 = vst.msk [vmem:[%s361 + $0x40] sm:$0xff] %vm562, %v1497
        %1514 = vst.msk [vmem:[%s361 + $0x48] sm:$0xff] %vm562, %v1498
        %1515 = vst.msk [vmem:[%s361 + $0x50] sm:$0xff] %vm562, %v1499
        %1516 = vst.msk [vmem:[%s361 + $0x58] sm:$0xff] %vm562, %v1500
        %1517 = vst.msk [vmem:[%s361 + $0x60] sm:$0xff] %vm562, %v1501
        %1518 = vst.msk [vmem:[%s361 + $0x68] sm:$0xff] %vm562, %v1502
        %1519 = vst.msk [vmem:[%s361 + $0x70] sm:$0xff] %vm562, %v1503
        %1520 = vst.msk [vmem:[%s361 + $0x78] sm:$0xff] %vm562, %v1504
      $region44: #{tpu_custom_call.1} parent=35 // pred_fallthru
        _
      %s1521 = smul.u32 16, %s21
      %p1522 = scmp.lt.s32.totalorder %s20, 7
      %s1523 = scalar_select %p1522, %s20, 7
      %p1524 = scmp.lt.s32.totalorder %s1521, 15
      %s1525 = scalar_select %p1524, %s1521, 15
      %s1526 = smul.addr %s1523, 16
      %s1527 = sadd.s32 %s1525, %s1526
      %s1528 = smul.addr %s1527, 8
      %s1529 = scalar_lea.vmem %s4, %s1528
      // Predicated region
      $region45: #{tpu_custom_call.1} parent=35 // pred_check
        %p1530 = pneg %p168
      $region46: #{tpu_custom_call.1} parent=35 // pred_check_branch
        %1532 = sbr.rel (%p1530) target = $region48
      $region47: #{tpu_custom_call.1} parent=35 // pred_region
        %s1533 = smul.u32 16, %s21
      $region48: #{tpu_custom_call.1} parent=35 // pred_fallthru
        _
    $region36: #{tpu_custom_call.1} parent=5 // pred_fallthru
      _
    %p1534 = scmp.le.s32.totalorder 2, %s10
    // Predicated region
    $region49: #{tpu_custom_call.1} parent=5 // pred_check
      %p1535 = pneg %p1534
    $region50: #{tpu_custom_call.1} parent=5 // pred_check_branch
      %1537 = sbr.rel (%p1535) target = $region52
    $region51: #{tpu_custom_call.1} parent=5 // pred_region
      %s1538 = ssub.s32 %s10, 2
      // Predicated region
      $region53: #{tpu_custom_call.1} parent=51 // pred_check
        %p1539 = pneg %p174
      $region54: #{tpu_custom_call.1} parent=51 // pred_check_branch
        %1541 = sbr.rel (%p1539) target = $region56
      $region55: #{tpu_custom_call.1} parent=51 // pred_region
        %s1542 = smul.u32 16, %s24
        %p1543 = scmp.lt.s32.totalorder %s23, 7
        %s1544 = scalar_select %p1543, %s23, 7
        %p1545 = scmp.lt.s32.totalorder %s1542, 15
        %s1546 = scalar_select %p1545, %s1542, 15
        %s1547 = smul.addr %s1544, 16
        %s1548 = sadd.s32 %s1546, %s1547
        %s1549 = smul.addr %s1548, 8
        %s1550 = scalar_lea.vmem %s4, %s1549
      $region56: #{tpu_custom_call.1} parent=51 // pred_fallthru
        _
    $region52: #{tpu_custom_call.1} parent=5 // pred_fallthru
      _
  $region6: #{tpu_custom_call.1} parent=0 // loop_footer
    %s14 = sadd.s32 1, %s10
  $region7: #{tpu_custom_call.1} parent=0 // loop_footer_branch
    %9 = sbr.rel target = $region3
  $region8: #{tpu_custom_call.1} parent=0 // loop_exit
    _

</llo_original>
